<compile_context>
chip_gen: v7x
topology: tpu7x:2x2x1
jax: 0.10.0
libtpu: 0.0.40
codegen_flags: <defaults>
</compile_context>

<pallas_src>
import math

import jax
import jax.numpy as jnp
from jax import lax
from jax.experimental import pallas as pl
from jax.experimental.pallas import tpu as pltpu

# ---- model hyper-params (small, consistent with dim % num_heads == 0) ----
BATCH = 2
TOKENS = 8
DIM = 128
NUM_HEADS = 4
HEAD_DIM = DIM // NUM_HEADS  # 32


def mha_kernel(x_ref, wqkv_ref, bqkv_ref, wo_ref, bo_ref, o_ref):
    # x_ref:    (B*T, D)   bf16
    # wqkv_ref: (D, 3D)    bf16   (in, out) layout; softmax scale folded into Q cols
    # bqkv_ref: (1, 3D)    f32    (Q bias already scaled)
    # wo_ref:   (D, D)     bf16   (in, out) layout
    # bo_ref:   (1, D)     f32
    # o_ref:    (B*T, D)   f32
    x = x_ref[...]  # (B*T, D) bf16

    # Fused Q/K/V projection: one big bf16 MXU matmul, f32 accumulation.
    qkv = jnp.dot(x, wqkv_ref[...], preferred_element_type=jnp.float32)
    qkv = qkv + bqkv_ref[...]                       # (B*T, 3D) f32

    wo = wo_ref[...]                                # (D, D) bf16, loaded once
    bo = bo_ref[...]                                # (1, D) f32

    for b in range(BATCH):                          # static unroll (B = 2)
        r0 = b * TOKENS
        # Fold the output-projection bias into the accumulator init.
        acc = jnp.broadcast_to(bo, (TOKENS, DIM)).astype(jnp.float32)
        for h in range(NUM_HEADS):                  # static unroll (H = 4)
            lo = h * HEAD_DIM
            qh = qkv[r0:r0 + TOKENS, lo:lo + HEAD_DIM].astype(jnp.bfloat16)
            kh = qkv[r0:r0 + TOKENS, DIM + lo:DIM + lo + HEAD_DIM].astype(jnp.bfloat16)
            vh = qkv[r0:r0 + TOKENS, 2 * DIM + lo:2 * DIM + lo + HEAD_DIM].astype(jnp.bfloat16)

            # scores = (scaled q) @ k^T without an explicit transpose
            # (contract head_dim of both operands).
            s = lax.dot_general(qh, kh, (((1,), (1,)), ((), ())),
                                preferred_element_type=jnp.float32)       # (T, T) f32
            s = s - jnp.max(s, axis=-1, keepdims=True)
            e = jnp.exp(s)
            p = e * pl.reciprocal(jnp.sum(e, axis=-1, keepdims=True), approx=True)

            ctx = jnp.dot(p.astype(jnp.bfloat16), vh,
                          preferred_element_type=jnp.float32)             # (T, hd) f32

            # Fold this head directly into the output projection (no concat):
            acc = acc + jnp.dot(ctx.astype(jnp.bfloat16),
                                wo[lo:lo + HEAD_DIM, :],
                                preferred_element_type=jnp.float32)       # (T, D) f32

        o_ref[r0:r0 + TOKENS, :] = acc.astype(o_ref.dtype)


@jax.jit
def multi_head_attention(x, wq, bq, wk, bk, wv, bv, wo, bo):
    """x: (B, T, D) f32.  Weights are PyTorch-layout (out, in); biases (D,)."""
    B, T, D = x.shape
    scale = 1.0 / math.sqrt(HEAD_DIM)

    # Fuse QKV weights into (D, 3D) (pre-transposed to (in, out)); fold the
    # softmax scale into the Q weights/bias so the kernel never scales scores.
    wqkv = jnp.concatenate([wq.T * scale, wk.T, wv.T], axis=1).astype(jnp.bfloat16)
    bqkv = jnp.concatenate([bq * scale, bk, bv]).reshape(1, 3 * D)   # f32
    wo_t = wo.T.astype(jnp.bfloat16)                                  # (D, D)
    bo2 = bo.reshape(1, D)                                            # f32

    # Fold batch into the block: (B, T, D) -> (B*T, D); bf16 operands for the MXU.
    x2 = x.reshape(B * T, D).astype(jnp.bfloat16)

    out = pl.pallas_call(
        mha_kernel,
        out_shape=jax.ShapeDtypeStruct((B * T, D), jnp.float32),
        grid_spec=pltpu.PrefetchScalarGridSpec(
            num_scalar_prefetch=0,
            grid=(1,),   # single invocation: everything fits in VMEM (~0.15 MiB)
            in_specs=[
                pl.BlockSpec((B * T, D), lambda i: (0, 0)),      # x
                pl.BlockSpec((D, 3 * D), lambda i: (0, 0)),      # fused Wqkv
                pl.BlockSpec((1, 3 * D), lambda i: (0, 0)),      # fused qkv bias
                pl.BlockSpec((D, D), lambda i: (0, 0)),          # Wo
                pl.BlockSpec((1, D), lambda i: (0, 0)),          # bo
            ],
            out_specs=pl.BlockSpec((B * T, D), lambda i: (0, 0)),
        ),
        compiler_params=pltpu.CompilerParams(
            dimension_semantics=("arbitrary",)),
    )(x2, wqkv, bqkv, wo_t, bo2)
    return out.reshape(B, T, D)


def reference_mha(x, wq, bq, wk, bk, wv, bv, wo, bo):
    """Pure-JAX f32 reference mirroring the PyTorch forward (eval mode)."""
    B, T, D = x.shape
    H, hd = NUM_HEADS, HEAD_DIM
    q = (x @ wq.T + bq).reshape(B, T, H, hd).transpose(0, 2, 1, 3)
    k = (x @ wk.T + bk).reshape(B, T, H, hd).transpose(0, 2, 3, 1)
    v = (x @ wv.T + bv).reshape(B, T, H, hd).transpose(0, 2, 1, 3)
    attn = jax.nn.softmax(jnp.matmul(q, k) / math.sqrt(hd), axis=3)
    out = jnp.matmul(attn, v).transpose(0, 2, 1, 3).reshape(B, T, D)
    return out @ wo.T + bo


def init_params(key, dim):
    """Deterministic init mimicking nn.Linear default uniform(-1/sqrt(in), 1/sqrt(in))."""
    bound = 1.0 / math.sqrt(dim)
    ks = jax.random.split(key, 8)

    def u(k, shape):
        return jax.random.uniform(k, shape, jnp.float32, -bound, bound)

    wq, bq = u(ks[0], (dim, dim)), u(ks[1], (dim,))
    wk, bk = u(ks[2], (dim, dim)), u(ks[3], (dim,))
    wv, bv = u(ks[4], (dim, dim)), u(ks[5], (dim,))
    wo, bo = u(ks[6], (dim, dim)), u(ks[7], (dim,))
    return wq, bq, wk, bk, wv, bv, wo, bo


if __name__ == "__main__":
    key = jax.random.PRNGKey(0)
    kx, kp = jax.random.split(key)
    x = jax.random.normal(kx, (BATCH, TOKENS, DIM), jnp.float32)
    params = init_params(kp, DIM)

    out = multi_head_attention(x, *params)
    out = jax.block_until_ready(out)

    ref = reference_mha(x, *params)
    assert out.shape == (BATCH, TOKENS, DIM)
    # bf16 matmul operands + approx reciprocal => compare at bf16-appropriate tolerance
    assert jnp.allclose(out, ref, atol=2e-2, rtol=2e-2), "mismatch vs reference"
    print("KERNEL_OK")
</pallas_src>

<mosaic_0001>
module attributes {stable_mosaic.version = 11 : i64} {
  func.func @mha_kernel(%arg0: i32, %arg1: memref<16x128xbf16, #tpu.memory_space<vmem>>, %arg2: memref<128x384xbf16, #tpu.memory_space<vmem>>, %arg3: memref<1x384xf32, #tpu.memory_space<vmem>>, %arg4: memref<128x128xbf16, #tpu.memory_space<vmem>>, %arg5: memref<1x128xf32, #tpu.memory_space<vmem>>, %arg6: memref<16x128xf32, #tpu.memory_space<vmem>>) attributes {dimension_semantics = [#tpu.dimension_semantics<arbitrary>], iteration_bounds = array<i64: 1>, scalar_prefetch = 0 : i64, scratch_operands = 0 : i64, tpu.core_type = #tpu.core_type<tc>, window_params = [{pipeline_mode = #tpu.pipeline_mode<synchronous>, transform_indices = @transform_0, window_bounds = array<i64: 16, 128>}, {pipeline_mode = #tpu.pipeline_mode<synchronous>, transform_indices = @transform_1, window_bounds = array<i64: 128, 384>}, {pipeline_mode = #tpu.pipeline_mode<synchronous>, transform_indices = @transform_2, window_bounds = array<i64: 1, 384>}, {pipeline_mode = #tpu.pipeline_mode<synchronous>, transform_indices = @transform_3, window_bounds = array<i64: 128, 128>}, {pipeline_mode = #tpu.pipeline_mode<synchronous>, transform_indices = @transform_4, window_bounds = array<i64: 1, 128>}, {pipeline_mode = #tpu.pipeline_mode<synchronous>, transform_indices = @transform_5, window_bounds = array<i64: 16, 128>}]} {
    %c0 = arith.constant 0 : index
    %c0_0 = arith.constant 0 : index
    %0 = vector.load %arg1[%c0, %c0_0] : memref<16x128xbf16, #tpu.memory_space<vmem>>, vector<16x128xbf16>
    %c0_1 = arith.constant 0 : index
    %c0_2 = arith.constant 0 : index
    %1 = vector.load %arg2[%c0_1, %c0_2] : memref<128x384xbf16, #tpu.memory_space<vmem>>, vector<128x384xbf16>
    %cst = arith.constant dense<0.000000e+00> : vector<16x384xf32>
    %2 = tpu.matmul %0, %1, %cst {dimension_numbers = #tpu.dot_dimension_numbers<[1], [0], [0], [1], [0, 0, 1, 1], [], []>} : vector<16x128xbf16>, vector<128x384xbf16>, vector<16x384xf32> -> vector<16x384xf32>
    %c0_3 = arith.constant 0 : index
    %c0_4 = arith.constant 0 : index
    %3 = vector.load %arg3[%c0_3, %c0_4] : memref<1x384xf32, #tpu.memory_space<vmem>>, vector<1x384xf32>
    %4 = vector.broadcast %3 : vector<1x384xf32> to vector<16x384xf32>
    %5 = arith.addf %2, %4 : vector<16x384xf32>
    %c0_5 = arith.constant 0 : index
    %c0_6 = arith.constant 0 : index
    %6 = vector.load %arg4[%c0_5, %c0_6] : memref<128x128xbf16, #tpu.memory_space<vmem>>, vector<128x128xbf16>
    %c0_7 = arith.constant 0 : index
    %c0_8 = arith.constant 0 : index
    %7 = vector.load %arg5[%c0_7, %c0_8] : memref<1x128xf32, #tpu.memory_space<vmem>>, vector<1x128xf32>
    %8 = vector.shape_cast %7 : vector<1x128xf32> to vector<1x128xf32>
    %9 = vector.broadcast %8 : vector<1x128xf32> to vector<8x128xf32>
    %10 = vector.extract_strided_slice %5 {offsets = [0, 0], sizes = [8, 32], strides = [1, 1]} : vector<16x384xf32> to vector<8x32xf32>
    %11 = arith.truncf %10 : vector<8x32xf32> to vector<8x32xbf16>
    %12 = vector.extract_strided_slice %5 {offsets = [0, 128], sizes = [8, 32], strides = [1, 1]} : vector<16x384xf32> to vector<8x32xf32>
    %13 = arith.truncf %12 : vector<8x32xf32> to vector<8x32xbf16>
    %14 = vector.extract_strided_slice %5 {offsets = [0, 256], sizes = [8, 32], strides = [1, 1]} : vector<16x384xf32> to vector<8x32xf32>
    %15 = arith.truncf %14 : vector<8x32xf32> to vector<8x32xbf16>
    %cst_9 = arith.constant dense<0.000000e+00> : vector<8x8xf32>
    %16 = tpu.matmul %11, %13, %cst_9 {dimension_numbers = #tpu.dot_dimension_numbers<[1], [1], [0], [0], [0, 0, 1, 0], [], []>} : vector<8x32xbf16>, vector<8x32xbf16>, vector<8x8xf32> -> vector<8x8xf32>
    %cst_10 = arith.constant dense<0xFF800000> : vector<8xf32>
    %17 = vector.multi_reduction <maximumf>, %16, %cst_10 [1] : vector<8x8xf32> to vector<8xf32>
    %18 = vector.shape_cast %17 : vector<8xf32> to vector<8x1xf32>
    %19 = vector.broadcast %18 : vector<8x1xf32> to vector<8x8xf32>
    %20 = arith.subf %16, %19 : vector<8x8xf32>
    %21 = math.exp %20 : vector<8x8xf32>
    %cst_11 = arith.constant dense<0.000000e+00> : vector<8xf32>
    %22 = vector.multi_reduction <add>, %21, %cst_11 [1] : vector<8x8xf32> to vector<8xf32>
    %23 = vector.shape_cast %22 : vector<8xf32> to vector<8x1xf32>
    %24 = tpu.reciprocal %23 {approx = true} : vector<8x1xf32> -> vector<8x1xf32>
    %25 = vector.broadcast %24 : vector<8x1xf32> to vector<8x8xf32>
    %26 = arith.mulf %21, %25 : vector<8x8xf32>
    %27 = arith.truncf %26 : vector<8x8xf32> to vector<8x8xbf16>
    %cst_12 = arith.constant dense<0.000000e+00> : vector<8x32xf32>
    %28 = tpu.matmul %27, %15, %cst_12 {dimension_numbers = #tpu.dot_dimension_numbers<[1], [0], [0], [1], [0, 0, 1, 1], [], []>} : vector<8x8xbf16>, vector<8x32xbf16>, vector<8x32xf32> -> vector<8x32xf32>
    %29 = arith.truncf %28 : vector<8x32xf32> to vector<8x32xbf16>
    %30 = vector.extract_strided_slice %6 {offsets = [0, 0], sizes = [32, 128], strides = [1, 1]} : vector<128x128xbf16> to vector<32x128xbf16>
    %cst_13 = arith.constant dense<0.000000e+00> : vector<8x128xf32>
    %31 = tpu.matmul %29, %30, %cst_13 {dimension_numbers = #tpu.dot_dimension_numbers<[1], [0], [0], [1], [0, 0, 1, 1], [], []>} : vector<8x32xbf16>, vector<32x128xbf16>, vector<8x128xf32> -> vector<8x128xf32>
    %32 = arith.addf %9, %31 : vector<8x128xf32>
    %33 = vector.extract_strided_slice %5 {offsets = [0, 32], sizes = [8, 32], strides = [1, 1]} : vector<16x384xf32> to vector<8x32xf32>
    %34 = arith.truncf %33 : vector<8x32xf32> to vector<8x32xbf16>
    %35 = vector.extract_strided_slice %5 {offsets = [0, 160], sizes = [8, 32], strides = [1, 1]} : vector<16x384xf32> to vector<8x32xf32>
    %36 = arith.truncf %35 : vector<8x32xf32> to vector<8x32xbf16>
    %37 = vector.extract_strided_slice %5 {offsets = [0, 288], sizes = [8, 32], strides = [1, 1]} : vector<16x384xf32> to vector<8x32xf32>
    %38 = arith.truncf %37 : vector<8x32xf32> to vector<8x32xbf16>
    %cst_14 = arith.constant dense<0.000000e+00> : vector<8x8xf32>
    %39 = tpu.matmul %34, %36, %cst_14 {dimension_numbers = #tpu.dot_dimension_numbers<[1], [1], [0], [0], [0, 0, 1, 0], [], []>} : vector<8x32xbf16>, vector<8x32xbf16>, vector<8x8xf32> -> vector<8x8xf32>
    %cst_15 = arith.constant dense<0xFF800000> : vector<8xf32>
    %40 = vector.multi_reduction <maximumf>, %39, %cst_15 [1] : vector<8x8xf32> to vector<8xf32>
    %41 = vector.shape_cast %40 : vector<8xf32> to vector<8x1xf32>
    %42 = vector.broadcast %41 : vector<8x1xf32> to vector<8x8xf32>
    %43 = arith.subf %39, %42 : vector<8x8xf32>
    %44 = math.exp %43 : vector<8x8xf32>
    %cst_16 = arith.constant dense<0.000000e+00> : vector<8xf32>
    %45 = vector.multi_reduction <add>, %44, %cst_16 [1] : vector<8x8xf32> to vector<8xf32>
    %46 = vector.shape_cast %45 : vector<8xf32> to vector<8x1xf32>
    %47 = tpu.reciprocal %46 {approx = true} : vector<8x1xf32> -> vector<8x1xf32>
    %48 = vector.broadcast %47 : vector<8x1xf32> to vector<8x8xf32>
    %49 = arith.mulf %44, %48 : vector<8x8xf32>
    %50 = arith.truncf %49 : vector<8x8xf32> to vector<8x8xbf16>
    %cst_17 = arith.constant dense<0.000000e+00> : vector<8x32xf32>
    %51 = tpu.matmul %50, %38, %cst_17 {dimension_numbers = #tpu.dot_dimension_numbers<[1], [0], [0], [1], [0, 0, 1, 1], [], []>} : vector<8x8xbf16>, vector<8x32xbf16>, vector<8x32xf32> -> vector<8x32xf32>
    %52 = arith.truncf %51 : vector<8x32xf32> to vector<8x32xbf16>
    %53 = vector.extract_strided_slice %6 {offsets = [32, 0], sizes = [32, 128], strides = [1, 1]} : vector<128x128xbf16> to vector<32x128xbf16>
    %cst_18 = arith.constant dense<0.000000e+00> : vector<8x128xf32>
    %54 = tpu.matmul %52, %53, %cst_18 {dimension_numbers = #tpu.dot_dimension_numbers<[1], [0], [0], [1], [0, 0, 1, 1], [], []>} : vector<8x32xbf16>, vector<32x128xbf16>, vector<8x128xf32> -> vector<8x128xf32>
    %55 = arith.addf %32, %54 : vector<8x128xf32>
    %56 = vector.extract_strided_slice %5 {offsets = [0, 64], sizes = [8, 32], strides = [1, 1]} : vector<16x384xf32> to vector<8x32xf32>
    %57 = arith.truncf %56 : vector<8x32xf32> to vector<8x32xbf16>
    %58 = vector.extract_strided_slice %5 {offsets = [0, 192], sizes = [8, 32], strides = [1, 1]} : vector<16x384xf32> to vector<8x32xf32>
    %59 = arith.truncf %58 : vector<8x32xf32> to vector<8x32xbf16>
    %60 = vector.extract_strided_slice %5 {offsets = [0, 320], sizes = [8, 32], strides = [1, 1]} : vector<16x384xf32> to vector<8x32xf32>
    %61 = arith.truncf %60 : vector<8x32xf32> to vector<8x32xbf16>
    %cst_19 = arith.constant dense<0.000000e+00> : vector<8x8xf32>
    %62 = tpu.matmul %57, %59, %cst_19 {dimension_numbers = #tpu.dot_dimension_numbers<[1], [1], [0], [0], [0, 0, 1, 0], [], []>} : vector<8x32xbf16>, vector<8x32xbf16>, vector<8x8xf32> -> vector<8x8xf32>
    %cst_20 = arith.constant dense<0xFF800000> : vector<8xf32>
    %63 = vector.multi_reduction <maximumf>, %62, %cst_20 [1] : vector<8x8xf32> to vector<8xf32>
    %64 = vector.shape_cast %63 : vector<8xf32> to vector<8x1xf32>
    %65 = vector.broadcast %64 : vector<8x1xf32> to vector<8x8xf32>
    %66 = arith.subf %62, %65 : vector<8x8xf32>
    %67 = math.exp %66 : vector<8x8xf32>
    %cst_21 = arith.constant dense<0.000000e+00> : vector<8xf32>
    %68 = vector.multi_reduction <add>, %67, %cst_21 [1] : vector<8x8xf32> to vector<8xf32>
    %69 = vector.shape_cast %68 : vector<8xf32> to vector<8x1xf32>
    %70 = tpu.reciprocal %69 {approx = true} : vector<8x1xf32> -> vector<8x1xf32>
    %71 = vector.broadcast %70 : vector<8x1xf32> to vector<8x8xf32>
    %72 = arith.mulf %67, %71 : vector<8x8xf32>
    %73 = arith.truncf %72 : vector<8x8xf32> to vector<8x8xbf16>
    %cst_22 = arith.constant dense<0.000000e+00> : vector<8x32xf32>
    %74 = tpu.matmul %73, %61, %cst_22 {dimension_numbers = #tpu.dot_dimension_numbers<[1], [0], [0], [1], [0, 0, 1, 1], [], []>} : vector<8x8xbf16>, vector<8x32xbf16>, vector<8x32xf32> -> vector<8x32xf32>
    %75 = arith.truncf %74 : vector<8x32xf32> to vector<8x32xbf16>
    %76 = vector.extract_strided_slice %6 {offsets = [64, 0], sizes = [32, 128], strides = [1, 1]} : vector<128x128xbf16> to vector<32x128xbf16>
    %cst_23 = arith.constant dense<0.000000e+00> : vector<8x128xf32>
    %77 = tpu.matmul %75, %76, %cst_23 {dimension_numbers = #tpu.dot_dimension_numbers<[1], [0], [0], [1], [0, 0, 1, 1], [], []>} : vector<8x32xbf16>, vector<32x128xbf16>, vector<8x128xf32> -> vector<8x128xf32>
    %78 = arith.addf %55, %77 : vector<8x128xf32>
    %79 = vector.extract_strided_slice %5 {offsets = [0, 96], sizes = [8, 32], strides = [1, 1]} : vector<16x384xf32> to vector<8x32xf32>
    %80 = arith.truncf %79 : vector<8x32xf32> to vector<8x32xbf16>
    %81 = vector.extract_strided_slice %5 {offsets = [0, 224], sizes = [8, 32], strides = [1, 1]} : vector<16x384xf32> to vector<8x32xf32>
    %82 = arith.truncf %81 : vector<8x32xf32> to vector<8x32xbf16>
    %83 = vector.extract_strided_slice %5 {offsets = [0, 352], sizes = [8, 32], strides = [1, 1]} : vector<16x384xf32> to vector<8x32xf32>
    %84 = arith.truncf %83 : vector<8x32xf32> to vector<8x32xbf16>
    %cst_24 = arith.constant dense<0.000000e+00> : vector<8x8xf32>
    %85 = tpu.matmul %80, %82, %cst_24 {dimension_numbers = #tpu.dot_dimension_numbers<[1], [1], [0], [0], [0, 0, 1, 0], [], []>} : vector<8x32xbf16>, vector<8x32xbf16>, vector<8x8xf32> -> vector<8x8xf32>
    %cst_25 = arith.constant dense<0xFF800000> : vector<8xf32>
    %86 = vector.multi_reduction <maximumf>, %85, %cst_25 [1] : vector<8x8xf32> to vector<8xf32>
    %87 = vector.shape_cast %86 : vector<8xf32> to vector<8x1xf32>
    %88 = vector.broadcast %87 : vector<8x1xf32> to vector<8x8xf32>
    %89 = arith.subf %85, %88 : vector<8x8xf32>
    %90 = math.exp %89 : vector<8x8xf32>
    %cst_26 = arith.constant dense<0.000000e+00> : vector<8xf32>
    %91 = vector.multi_reduction <add>, %90, %cst_26 [1] : vector<8x8xf32> to vector<8xf32>
    %92 = vector.shape_cast %91 : vector<8xf32> to vector<8x1xf32>
    %93 = tpu.reciprocal %92 {approx = true} : vector<8x1xf32> -> vector<8x1xf32>
    %94 = vector.broadcast %93 : vector<8x1xf32> to vector<8x8xf32>
    %95 = arith.mulf %90, %94 : vector<8x8xf32>
    %96 = arith.truncf %95 : vector<8x8xf32> to vector<8x8xbf16>
    %cst_27 = arith.constant dense<0.000000e+00> : vector<8x32xf32>
    %97 = tpu.matmul %96, %84, %cst_27 {dimension_numbers = #tpu.dot_dimension_numbers<[1], [0], [0], [1], [0, 0, 1, 1], [], []>} : vector<8x8xbf16>, vector<8x32xbf16>, vector<8x32xf32> -> vector<8x32xf32>
    %98 = arith.truncf %97 : vector<8x32xf32> to vector<8x32xbf16>
    %99 = vector.extract_strided_slice %6 {offsets = [96, 0], sizes = [32, 128], strides = [1, 1]} : vector<128x128xbf16> to vector<32x128xbf16>
    %cst_28 = arith.constant dense<0.000000e+00> : vector<8x128xf32>
    %100 = tpu.matmul %98, %99, %cst_28 {dimension_numbers = #tpu.dot_dimension_numbers<[1], [0], [0], [1], [0, 0, 1, 1], [], []>} : vector<8x32xbf16>, vector<32x128xbf16>, vector<8x128xf32> -> vector<8x128xf32>
    %101 = arith.addf %78, %100 : vector<8x128xf32>
    %c0_29 = arith.constant 0 : index
    %c0_30 = arith.constant 0 : index
    %102 = vector.load %arg6[%c0_29, %c0_30] : memref<16x128xf32, #tpu.memory_space<vmem>>, vector<8x128xf32>
    tpu.vector_store %arg6[%c0_29, %c0_30], %101 {strides = array<i32>} : memref<16x128xf32, #tpu.memory_space<vmem>>, vector<8x128xf32>,
    %103 = vector.shape_cast %7 : vector<1x128xf32> to vector<1x128xf32>
    %104 = vector.broadcast %103 : vector<1x128xf32> to vector<8x128xf32>
    %105 = vector.extract_strided_slice %5 {offsets = [8, 0], sizes = [8, 32], strides = [1, 1]} : vector<16x384xf32> to vector<8x32xf32>
    %106 = arith.truncf %105 : vector<8x32xf32> to vector<8x32xbf16>
    %107 = vector.extract_strided_slice %5 {offsets = [8, 128], sizes = [8, 32], strides = [1, 1]} : vector<16x384xf32> to vector<8x32xf32>
    %108 = arith.truncf %107 : vector<8x32xf32> to vector<8x32xbf16>
    %109 = vector.extract_strided_slice %5 {offsets = [8, 256], sizes = [8, 32], strides = [1, 1]} : vector<16x384xf32> to vector<8x32xf32>
    %110 = arith.truncf %109 : vector<8x32xf32> to vector<8x32xbf16>
    %cst_31 = arith.constant dense<0.000000e+00> : vector<8x8xf32>
    %111 = tpu.matmul %106, %108, %cst_31 {dimension_numbers = #tpu.dot_dimension_numbers<[1], [1], [0], [0], [0, 0, 1, 0], [], []>} : vector<8x32xbf16>, vector<8x32xbf16>, vector<8x8xf32> -> vector<8x8xf32>
    %cst_32 = arith.constant dense<0xFF800000> : vector<8xf32>
    %112 = vector.multi_reduction <maximumf>, %111, %cst_32 [1] : vector<8x8xf32> to vector<8xf32>
    %113 = vector.shape_cast %112 : vector<8xf32> to vector<8x1xf32>
    %114 = vector.broadcast %113 : vector<8x1xf32> to vector<8x8xf32>
    %115 = arith.subf %111, %114 : vector<8x8xf32>
    %116 = math.exp %115 : vector<8x8xf32>
    %cst_33 = arith.constant dense<0.000000e+00> : vector<8xf32>
    %117 = vector.multi_reduction <add>, %116, %cst_33 [1] : vector<8x8xf32> to vector<8xf32>
    %118 = vector.shape_cast %117 : vector<8xf32> to vector<8x1xf32>
    %119 = tpu.reciprocal %118 {approx = true} : vector<8x1xf32> -> vector<8x1xf32>
    %120 = vector.broadcast %119 : vector<8x1xf32> to vector<8x8xf32>
    %121 = arith.mulf %116, %120 : vector<8x8xf32>
    %122 = arith.truncf %121 : vector<8x8xf32> to vector<8x8xbf16>
    %cst_34 = arith.constant dense<0.000000e+00> : vector<8x32xf32>
    %123 = tpu.matmul %122, %110, %cst_34 {dimension_numbers = #tpu.dot_dimension_numbers<[1], [0], [0], [1], [0, 0, 1, 1], [], []>} : vector<8x8xbf16>, vector<8x32xbf16>, vector<8x32xf32> -> vector<8x32xf32>
    %124 = arith.truncf %123 : vector<8x32xf32> to vector<8x32xbf16>
    %125 = vector.extract_strided_slice %6 {offsets = [0, 0], sizes = [32, 128], strides = [1, 1]} : vector<128x128xbf16> to vector<32x128xbf16>
    %cst_35 = arith.constant dense<0.000000e+00> : vector<8x128xf32>
    %126 = tpu.matmul %124, %125, %cst_35 {dimension_numbers = #tpu.dot_dimension_numbers<[1], [0], [0], [1], [0, 0, 1, 1], [], []>} : vector<8x32xbf16>, vector<32x128xbf16>, vector<8x128xf32> -> vector<8x128xf32>
    %127 = arith.addf %104, %126 : vector<8x128xf32>
    %128 = vector.extract_strided_slice %5 {offsets = [8, 32], sizes = [8, 32], strides = [1, 1]} : vector<16x384xf32> to vector<8x32xf32>
    %129 = arith.truncf %128 : vector<8x32xf32> to vector<8x32xbf16>
    %130 = vector.extract_strided_slice %5 {offsets = [8, 160], sizes = [8, 32], strides = [1, 1]} : vector<16x384xf32> to vector<8x32xf32>
    %131 = arith.truncf %130 : vector<8x32xf32> to vector<8x32xbf16>
    %132 = vector.extract_strided_slice %5 {offsets = [8, 288], sizes = [8, 32], strides = [1, 1]} : vector<16x384xf32> to vector<8x32xf32>
    %133 = arith.truncf %132 : vector<8x32xf32> to vector<8x32xbf16>
    %cst_36 = arith.constant dense<0.000000e+00> : vector<8x8xf32>
    %134 = tpu.matmul %129, %131, %cst_36 {dimension_numbers = #tpu.dot_dimension_numbers<[1], [1], [0], [0], [0, 0, 1, 0], [], []>} : vector<8x32xbf16>, vector<8x32xbf16>, vector<8x8xf32> -> vector<8x8xf32>
    %cst_37 = arith.constant dense<0xFF800000> : vector<8xf32>
    %135 = vector.multi_reduction <maximumf>, %134, %cst_37 [1] : vector<8x8xf32> to vector<8xf32>
    %136 = vector.shape_cast %135 : vector<8xf32> to vector<8x1xf32>
    %137 = vector.broadcast %136 : vector<8x1xf32> to vector<8x8xf32>
    %138 = arith.subf %134, %137 : vector<8x8xf32>
    %139 = math.exp %138 : vector<8x8xf32>
    %cst_38 = arith.constant dense<0.000000e+00> : vector<8xf32>
    %140 = vector.multi_reduction <add>, %139, %cst_38 [1] : vector<8x8xf32> to vector<8xf32>
    %141 = vector.shape_cast %140 : vector<8xf32> to vector<8x1xf32>
    %142 = tpu.reciprocal %141 {approx = true} : vector<8x1xf32> -> vector<8x1xf32>
    %143 = vector.broadcast %142 : vector<8x1xf32> to vector<8x8xf32>
    %144 = arith.mulf %139, %143 : vector<8x8xf32>
    %145 = arith.truncf %144 : vector<8x8xf32> to vector<8x8xbf16>
    %cst_39 = arith.constant dense<0.000000e+00> : vector<8x32xf32>
    %146 = tpu.matmul %145, %133, %cst_39 {dimension_numbers = #tpu.dot_dimension_numbers<[1], [0], [0], [1], [0, 0, 1, 1], [], []>} : vector<8x8xbf16>, vector<8x32xbf16>, vector<8x32xf32> -> vector<8x32xf32>
    %147 = arith.truncf %146 : vector<8x32xf32> to vector<8x32xbf16>
    %148 = vector.extract_strided_slice %6 {offsets = [32, 0], sizes = [32, 128], strides = [1, 1]} : vector<128x128xbf16> to vector<32x128xbf16>
    %cst_40 = arith.constant dense<0.000000e+00> : vector<8x128xf32>
    %149 = tpu.matmul %147, %148, %cst_40 {dimension_numbers = #tpu.dot_dimension_numbers<[1], [0], [0], [1], [0, 0, 1, 1], [], []>} : vector<8x32xbf16>, vector<32x128xbf16>, vector<8x128xf32> -> vector<8x128xf32>
    %150 = arith.addf %127, %149 : vector<8x128xf32>
    %151 = vector.extract_strided_slice %5 {offsets = [8, 64], sizes = [8, 32], strides = [1, 1]} : vector<16x384xf32> to vector<8x32xf32>
    %152 = arith.truncf %151 : vector<8x32xf32> to vector<8x32xbf16>
    %153 = vector.extract_strided_slice %5 {offsets = [8, 192], sizes = [8, 32], strides = [1, 1]} : vector<16x384xf32> to vector<8x32xf32>
    %154 = arith.truncf %153 : vector<8x32xf32> to vector<8x32xbf16>
    %155 = vector.extract_strided_slice %5 {offsets = [8, 320], sizes = [8, 32], strides = [1, 1]} : vector<16x384xf32> to vector<8x32xf32>
    %156 = arith.truncf %155 : vector<8x32xf32> to vector<8x32xbf16>
    %cst_41 = arith.constant dense<0.000000e+00> : vector<8x8xf32>
    %157 = tpu.matmul %152, %154, %cst_41 {dimension_numbers = #tpu.dot_dimension_numbers<[1], [1], [0], [0], [0, 0, 1, 0], [], []>} : vector<8x32xbf16>, vector<8x32xbf16>, vector<8x8xf32> -> vector<8x8xf32>
    %cst_42 = arith.constant dense<0xFF800000> : vector<8xf32>
    %158 = vector.multi_reduction <maximumf>, %157, %cst_42 [1] : vector<8x8xf32> to vector<8xf32>
    %159 = vector.shape_cast %158 : vector<8xf32> to vector<8x1xf32>
    %160 = vector.broadcast %159 : vector<8x1xf32> to vector<8x8xf32>
    %161 = arith.subf %157, %160 : vector<8x8xf32>
    %162 = math.exp %161 : vector<8x8xf32>
    %cst_43 = arith.constant dense<0.000000e+00> : vector<8xf32>
    %163 = vector.multi_reduction <add>, %162, %cst_43 [1] : vector<8x8xf32> to vector<8xf32>
    %164 = vector.shape_cast %163 : vector<8xf32> to vector<8x1xf32>
    %165 = tpu.reciprocal %164 {approx = true} : vector<8x1xf32> -> vector<8x1xf32>
    %166 = vector.broadcast %165 : vector<8x1xf32> to vector<8x8xf32>
    %167 = arith.mulf %162, %166 : vector<8x8xf32>
    %168 = arith.truncf %167 : vector<8x8xf32> to vector<8x8xbf16>
    %cst_44 = arith.constant dense<0.000000e+00> : vector<8x32xf32>
    %169 = tpu.matmul %168, %156, %cst_44 {dimension_numbers = #tpu.dot_dimension_numbers<[1], [0], [0], [1], [0, 0, 1, 1], [], []>} : vector<8x8xbf16>, vector<8x32xbf16>, vector<8x32xf32> -> vector<8x32xf32>
    %170 = arith.truncf %169 : vector<8x32xf32> to vector<8x32xbf16>
    %171 = vector.extract_strided_slice %6 {offsets = [64, 0], sizes = [32, 128], strides = [1, 1]} : vector<128x128xbf16> to vector<32x128xbf16>
    %cst_45 = arith.constant dense<0.000000e+00> : vector<8x128xf32>
    %172 = tpu.matmul %170, %171, %cst_45 {dimension_numbers = #tpu.dot_dimension_numbers<[1], [0], [0], [1], [0, 0, 1, 1], [], []>} : vector<8x32xbf16>, vector<32x128xbf16>, vector<8x128xf32> -> vector<8x128xf32>
    %173 = arith.addf %150, %172 : vector<8x128xf32>
    %174 = vector.extract_strided_slice %5 {offsets = [8, 96], sizes = [8, 32], strides = [1, 1]} : vector<16x384xf32> to vector<8x32xf32>
    %175 = arith.truncf %174 : vector<8x32xf32> to vector<8x32xbf16>
    %176 = vector.extract_strided_slice %5 {offsets = [8, 224], sizes = [8, 32], strides = [1, 1]} : vector<16x384xf32> to vector<8x32xf32>
    %177 = arith.truncf %176 : vector<8x32xf32> to vector<8x32xbf16>
    %178 = vector.extract_strided_slice %5 {offsets = [8, 352], sizes = [8, 32], strides = [1, 1]} : vector<16x384xf32> to vector<8x32xf32>
    %179 = arith.truncf %178 : vector<8x32xf32> to vector<8x32xbf16>
    %cst_46 = arith.constant dense<0.000000e+00> : vector<8x8xf32>
    %180 = tpu.matmul %175, %177, %cst_46 {dimension_numbers = #tpu.dot_dimension_numbers<[1], [1], [0], [0], [0, 0, 1, 0], [], []>} : vector<8x32xbf16>, vector<8x32xbf16>, vector<8x8xf32> -> vector<8x8xf32>
    %cst_47 = arith.constant dense<0xFF800000> : vector<8xf32>
    %181 = vector.multi_reduction <maximumf>, %180, %cst_47 [1] : vector<8x8xf32> to vector<8xf32>
    %182 = vector.shape_cast %181 : vector<8xf32> to vector<8x1xf32>
    %183 = vector.broadcast %182 : vector<8x1xf32> to vector<8x8xf32>
    %184 = arith.subf %180, %183 : vector<8x8xf32>
    %185 = math.exp %184 : vector<8x8xf32>
    %cst_48 = arith.constant dense<0.000000e+00> : vector<8xf32>
    %186 = vector.multi_reduction <add>, %185, %cst_48 [1] : vector<8x8xf32> to vector<8xf32>
    %187 = vector.shape_cast %186 : vector<8xf32> to vector<8x1xf32>
    %188 = tpu.reciprocal %187 {approx = true} : vector<8x1xf32> -> vector<8x1xf32>
    %189 = vector.broadcast %188 : vector<8x1xf32> to vector<8x8xf32>
    %190 = arith.mulf %185, %189 : vector<8x8xf32>
    %191 = arith.truncf %190 : vector<8x8xf32> to vector<8x8xbf16>
    %cst_49 = arith.constant dense<0.000000e+00> : vector<8x32xf32>
    %192 = tpu.matmul %191, %179, %cst_49 {dimension_numbers = #tpu.dot_dimension_numbers<[1], [0], [0], [1], [0, 0, 1, 1], [], []>} : vector<8x8xbf16>, vector<8x32xbf16>, vector<8x32xf32> -> vector<8x32xf32>
    %193 = arith.truncf %192 : vector<8x32xf32> to vector<8x32xbf16>
    %194 = vector.extract_strided_slice %6 {offsets = [96, 0], sizes = [32, 128], strides = [1, 1]} : vector<128x128xbf16> to vector<32x128xbf16>
    %cst_50 = arith.constant dense<0.000000e+00> : vector<8x128xf32>
    %195 = tpu.matmul %193, %194, %cst_50 {dimension_numbers = #tpu.dot_dimension_numbers<[1], [0], [0], [1], [0, 0, 1, 1], [], []>} : vector<8x32xbf16>, vector<32x128xbf16>, vector<8x128xf32> -> vector<8x128xf32>
    %196 = arith.addf %173, %195 : vector<8x128xf32>
    %c8 = arith.constant 8 : index
    %c0_51 = arith.constant 0 : index
    %197 = vector.load %arg6[%c8, %c0_51] : memref<16x128xf32, #tpu.memory_space<vmem>>, vector<8x128xf32>
    tpu.vector_store %arg6[%c8, %c0_51], %196 {strides = array<i32>} : memref<16x128xf32, #tpu.memory_space<vmem>>, vector<8x128xf32>,
    return
  }
  func.func @transform_0(%arg0: i32) -> (i32, i32) {
    %c0_i32 = arith.constant 0 : i32
    %c0_i32_0 = arith.constant 0 : i32
    %c0_i32_1 = arith.constant 0 : i32
    return %c0_i32, %c0_i32_0 : i32, i32
  }
  func.func @transform_1(%arg0: i32) -> (i32, i32) {
    %c0_i32 = arith.constant 0 : i32
    %c0_i32_0 = arith.constant 0 : i32
    %c0_i32_1 = arith.constant 0 : i32
    return %c0_i32, %c0_i32_0 : i32, i32
  }
  func.func @transform_2(%arg0: i32) -> (i32, i32) {
    %c0_i32 = arith.constant 0 : i32
    %c0_i32_0 = arith.constant 0 : i32
    %c0_i32_1 = arith.constant 0 : i32
    return %c0_i32, %c0_i32_0 : i32, i32
  }
  func.func @transform_3(%arg0: i32) -> (i32, i32) {
    %c0_i32 = arith.constant 0 : i32
    %c0_i32_0 = arith.constant 0 : i32
    %c0_i32_1 = arith.constant 0 : i32
    return %c0_i32, %c0_i32_0 : i32, i32
  }
  func.func @transform_4(%arg0: i32) -> (i32, i32) {
    %c0_i32 = arith.constant 0 : i32
    %c0_i32_0 = arith.constant 0 : i32
    %c0_i32_1 = arith.constant 0 : i32
    return %c0_i32, %c0_i32_0 : i32, i32
  }
  func.func @transform_5(%arg0: i32) -> (i32, i32) {
    %c0_i32 = arith.constant 0 : i32
    %c0_i32_0 = arith.constant 0 : i32
    %c0_i32_1 = arith.constant 0 : i32
    return %c0_i32, %c0_i32_0 : i32, i32
  }
}

</mosaic_0001>

<llo_original>
// kernel: multi_head_attention.1
$region0: #{multi_head_attention.1}
  #allocation0 [shape = 'u32[]', space=smem, size = 0x4, offset = 0x4, fixed_abs, tag = 'smem constant byte address 0x4 - core index']
  #allocation1 [shape = 'u32[144,128]{1,0:T(1,128)}', space=vmem, size = 0x12000, scoped, tag = 'internal scratch']
  %s0 = inlined_call_operand.vmem [shape: bf16[16,128], index: 0, kind: input, shape index: {}]
  %s1 = inlined_call_operand.vmem [shape: bf16[128,384], index: 1, kind: input, shape index: {}]
  %s2 = inlined_call_operand.vmem [shape: f32[1,384], index: 2, kind: input, shape index: {}]
  %s3 = inlined_call_operand.vmem [shape: bf16[128,128], index: 3, kind: input, shape index: {}]
  %s4 = inlined_call_operand.vmem [shape: f32[1,128], index: 4, kind: input, shape index: {}]
  %s5 = inlined_call_operand.hbm [shape: f32[16,128], index: 5, kind: output, shape index: {}]
  %s6 = sld [smem:[#allocation0]]
  $region30: #{multi_head_attention.1} parent=0
    _
  %s8 = ssub.s32 1, %s6
  %s9 = scalar_select 0, %s8, %s6
  $region1: #{multi_head_attention.1} parent=0
    #allocation2 [shape = 'u8[8192]{0}', space=vmem, size = 0x2000, scoped, tag = 'output window, operand 0, single buffered']
    #allocation3 [shape = 's32[1]{0}', space=sflag, size = 0x4, scoped, tag = 'scoped memory for multi_head_attention.1']
    %10 = vsyncpa [#allocation3], 0
    // Predicated region
    $region2: #{multi_head_attention.1} parent=1 // pred_check
      _
    $region3: #{multi_head_attention.1} parent=1 // pred_check_branch
      %12 = sbr.rel (0) target = $region5
    $region4: #{multi_head_attention.1} parent=1 // pred_region
      _
    $region5: #{multi_head_attention.1} parent=1 // pred_fallthru
      _
    // Predicated region
    $region6: #{multi_head_attention.1} parent=1 // pred_check
      _
    $region7: #{multi_head_attention.1} parent=1 // pred_check_branch
      %14 = sbr.rel (0) target = $region9
    $region8: #{multi_head_attention.1} parent=1 // pred_region
      _
    $region9: #{multi_head_attention.1} parent=1 // pred_fallthru
      _
    // Predicated region
    $region10: #{multi_head_attention.1} parent=1 // pred_check
      _
    $region11: #{multi_head_attention.1} parent=1 // pred_check_branch
      %16 = sbr.rel (0) target = $region13
    $region12: #{multi_head_attention.1} parent=1 // pred_region
      _
    $region13: #{multi_head_attention.1} parent=1 // pred_fallthru
      _
    // Predicated region
    $region14: #{multi_head_attention.1} parent=1 // pred_check
      _
    $region15: #{multi_head_attention.1} parent=1 // pred_check_branch
      %18 = sbr.rel (0) target = $region17
    $region16: #{multi_head_attention.1} parent=1 // pred_region
      _
    $region17: #{multi_head_attention.1} parent=1 // pred_fallthru
      _
    // Predicated region
    $region18: #{multi_head_attention.1} parent=1 // pred_check
      _
    $region19: #{multi_head_attention.1} parent=1 // pred_check_branch
      %20 = sbr.rel (0) target = $region21
    $region20: #{multi_head_attention.1} parent=1 // pred_region
      _
    $region21: #{multi_head_attention.1} parent=1 // pred_fallthru
      _
    %v22 = vld [vmem:[%s0] sm:$0xf]
    %v23 = vld [vmem:[%s0 + $0x4] sm:$0xf]
    %v24 = vld [vmem:[%s1] sm:$0xff]
    %v25 = vld [vmem:[%s1 + $0x8] sm:$0xf]
    %v26 = vld [vmem:[%s1 + $0xc] sm:$0xff]
    %v27 = vld [vmem:[%s1 + $0x14] sm:$0xf]
    %v28 = vld [vmem:[%s1 + $0x18] sm:$0xff]
    %v29 = vld [vmem:[%s1 + $0x20] sm:$0xf]
    %v30 = vld [vmem:[%s1 + $0x24] sm:$0xff]
    %v31 = vld [vmem:[%s1 + $0x2c] sm:$0xf]
    %v32 = vld [vmem:[%s1 + $0x30] sm:$0xff]
    %v33 = vld [vmem:[%s1 + $0x38] sm:$0xf]
    %v34 = vld [vmem:[%s1 + $0x3c] sm:$0xff]
    %v35 = vld [vmem:[%s1 + $0x44] sm:$0xf]
    %v36 = vld [vmem:[%s1 + $0x48] sm:$0xff]
    %v37 = vld [vmem:[%s1 + $0x50] sm:$0xf]
    %v38 = vld [vmem:[%s1 + $0x54] sm:$0xff]
    %v39 = vld [vmem:[%s1 + $0x5c] sm:$0xf]
    %v40 = vld [vmem:[%s1 + $0x60] sm:$0xff]
    %v41 = vld [vmem:[%s1 + $0x68] sm:$0xf]
    %v42 = vld [vmem:[%s1 + $0x6c] sm:$0xff]
    %v43 = vld [vmem:[%s1 + $0x74] sm:$0xf]
    %v44 = vld [vmem:[%s1 + $0x78] sm:$0xff]
    %v45 = vld [vmem:[%s1 + $0x80] sm:$0xf]
    %v46 = vld [vmem:[%s1 + $0x84] sm:$0xff]
    %v47 = vld [vmem:[%s1 + $0x8c] sm:$0xf]
    %v48 = vld [vmem:[%s1 + $0x90] sm:$0xff]
    %v49 = vld [vmem:[%s1 + $0x98] sm:$0xf]
    %v50 = vld [vmem:[%s1 + $0x9c] sm:$0xff]
    %v51 = vld [vmem:[%s1 + $0xa4] sm:$0xf]
    %v52 = vld [vmem:[%s1 + $0xa8] sm:$0xff]
    %v53 = vld [vmem:[%s1 + $0xb0] sm:$0xf]
    %v54 = vld [vmem:[%s1 + $0xb4] sm:$0xff]
    %v55 = vld [vmem:[%s1 + $0xbc] sm:$0xf]
    %v56 = vld [vmem:[%s2] sm:$0x7]
    %v58 = vlaneseq
    %v59 = vshrl.u32 %v58, 7
    %v60 = vsub.s32 0, %v59
    %v61 = vrot.slane %v56, %v60
    %v62 = vlaneseq
    %v63 = vshrl.u32 %v62, 7
    %v64 = vsub.s32 1, %v63
    %v65 = vrot.slane %v56, %v64
    %v66 = vlaneseq
    %v67 = vshrl.u32 %v66, 7
    %v68 = vsub.s32 2, %v67
    %v69 = vrot.slane %v56, %v68
    %v75 = vunpack.c.l.b16 %v22
    %v76 = vunpack.c.l.b16 %v23
    %v77 = vpack.c.b16 %v76, %v75
    %v111 = vunpack.c.l.b16 %v24
    %v112 = vunpack.c.h.b16 %v24
    %v113 = vunpack.c.l.b16 %v25
    %v114 = vunpack.c.l.b16 %v26
    %v115 = vunpack.c.h.b16 %v26
    %v116 = vunpack.c.l.b16 %v27
    %v117 = vunpack.c.l.b16 %v28
    %v118 = vunpack.c.h.b16 %v28
    %v119 = vunpack.c.l.b16 %v29
    %v120 = vunpack.c.l.b16 %v30
    %v121 = vunpack.c.h.b16 %v30
    %v122 = vunpack.c.l.b16 %v31
    %v123 = vunpack.c.l.b16 %v32
    %v124 = vunpack.c.h.b16 %v32
    %v125 = vunpack.c.l.b16 %v33
    %v126 = vunpack.c.l.b16 %v34
    %v127 = vunpack.c.h.b16 %v34
    %v128 = vunpack.c.l.b16 %v35
    %v129 = vunpack.c.l.b16 %v36
    %v130 = vunpack.c.h.b16 %v36
    %v131 = vunpack.c.l.b16 %v37
    %v132 = vunpack.c.l.b16 %v38
    %v133 = vunpack.c.h.b16 %v38
    %v134 = vunpack.c.l.b16 %v39
    %v135 = vunpack.c.l.b16 %v40
    %v136 = vunpack.c.h.b16 %v40
    %v137 = vunpack.c.l.b16 %v41
    %v138 = vunpack.c.l.b16 %v42
    %v139 = vunpack.c.h.b16 %v42
    %v140 = vunpack.c.l.b16 %v43
    %v141 = vunpack.c.l.b16 %v44
    %v142 = vunpack.c.h.b16 %v44
    %v143 = vunpack.c.l.b16 %v45
    %v144 = vunpack.c.l.b16 %v46
    %v145 = vunpack.c.h.b16 %v46
    %v146 = vunpack.c.l.b16 %v47
    %v147 = vunpack.c.l.b16 %v48
    %v148 = vunpack.c.h.b16 %v48
    %v149 = vunpack.c.l.b16 %v49
    %v150 = vunpack.c.l.b16 %v50
    %v151 = vunpack.c.h.b16 %v50
    %v152 = vunpack.c.l.b16 %v51
    %v153 = vunpack.c.l.b16 %v52
    %v154 = vunpack.c.h.b16 %v52
    %v155 = vunpack.c.l.b16 %v53
    %v156 = vunpack.c.l.b16 %v54
    %v157 = vunpack.c.h.b16 %v54
    %v158 = vunpack.c.l.b16 %v55
    %v159 = vpack.c.b16 %v114, %v111
    %v160 = vpack.c.b16 %v115, %v112
    %v161 = vpack.c.b16 %v116, %v113
    %v162 = vpack.c.b16 %v120, %v117
    %v163 = vpack.c.b16 %v121, %v118
    %v164 = vpack.c.b16 %v122, %v119
    %v165 = vpack.c.b16 %v126, %v123
    %v166 = vpack.c.b16 %v127, %v124
    %v167 = vpack.c.b16 %v128, %v125
    %v168 = vpack.c.b16 %v132, %v129
    %v169 = vpack.c.b16 %v133, %v130
    %v170 = vpack.c.b16 %v134, %v131
    %v171 = vpack.c.b16 %v138, %v135
    %v172 = vpack.c.b16 %v139, %v136
    %v173 = vpack.c.b16 %v140, %v137
    %v174 = vpack.c.b16 %v144, %v141
    %v175 = vpack.c.b16 %v145, %v142
    %v176 = vpack.c.b16 %v146, %v143
    %v177 = vpack.c.b16 %v150, %v147
    %v178 = vpack.c.b16 %v151, %v148
    %v179 = vpack.c.b16 %v152, %v149
    %v180 = vpack.c.b16 %v156, %v153
    %v181 = vpack.c.b16 %v157, %v154
    %v182 = vpack.c.b16 %v158, %v155
    %207 = vmatprep.subr.bf16.mxu0 %v160
    %208 = vmatpush1.bf16.msra.mxu0 %v159
    %209 = vmatprep.subr.bf16.mxu0 %v163
    %210 = vmatpush1.bf16.msra.mxu0 %v162
    %211 = vmatprep.subr.bf16.mxu0 %v166
    %212 = vmatpush1.bf16.msra.mxu0 %v165
    %213 = vmatprep.subr.bf16.mxu0 %v169
    %214 = vmatpush1.bf16.msra.mxu0 %v168
    %215 = vmatprep.subr.bf16.mxu0 %v172
    %216 = vmatpush1.bf16.msra.mxu0 %v171
    %217 = vmatprep.subr.bf16.mxu0 %v175
    %218 = vmatpush1.bf16.msra.mxu0 %v174
    %219 = vmatprep.subr.bf16.mxu0 %v178
    %220 = vmatpush1.bf16.msra.mxu0 %v177
    %221 = vmatprep.subr.bf16.mxu0 %v181
    %222 = vmatpush1.bf16.msra.mxu0 %v180
    %223 = vmatprep.subr.bf16.mxu0 0
    %224 = vmatpush1.bf16.msra.mxu0 0
    %225 = vmatprep.subr.bf16.mxu0 0
    %226 = vmatpush1.bf16.msra.mxu0 0
    %227 = vmatprep.subr.bf16.mxu0 0
    %228 = vmatpush1.bf16.msra.mxu0 0
    %229 = vmatprep.subr.bf16.mxu0 0
    %230 = vmatpush1.bf16.msra.mxu0 0
    %231 = vmatprep.subr.bf16.mxu0 0
    %232 = vmatpush1.bf16.msra.mxu0 0
    %233 = vmatprep.subr.bf16.mxu0 0
    %234 = vmatpush1.bf16.msra.mxu0 0
    %235 = vmatprep.subr.bf16.mxu0 0
    %236 = vmatpush1.bf16.msra.mxu0 0
    %237 = vmatprep.subr.bf16.mxu0 0
    %238 = vmatpush1.bf16.msra.mxu0 0
    %239 = vmatprep.mubr.bf16.mxu0 0
    %240 = vmatmul.mubr.bf16.gmra.mrb[0].mxu0 %v77
    %v241 = vpop.f32.mrb[0].mxu0
    %v242 = vadd.f32 %v61, %v241
    %v243 = vpop.f32.mrb[0].mxu0
    %v244 = vadd.f32 %v65, %v243
    %v245 = vpop.f32.mrb[0].mxu0
    %v246 = vadd.f32 %v61, %v245
    %v247 = vpop.f32.mrb[0].mxu0
    %v248 = vadd.f32 %v65, %v247
    %249 = vdwg.mxu0
    %250 = vmatprep.subr.bf16.mxu0 0
    %251 = vmatpush1.bf16.msra.mxu0 %v161
    %252 = vmatprep.subr.bf16.mxu0 0
    %253 = vmatpush1.bf16.msra.mxu0 %v164
    %254 = vmatprep.subr.bf16.mxu0 0
    %255 = vmatpush1.bf16.msra.mxu0 %v167
    %256 = vmatprep.subr.bf16.mxu0 0
    %257 = vmatpush1.bf16.msra.mxu0 %v170
    %258 = vmatprep.subr.bf16.mxu0 0
    %259 = vmatpush1.bf16.msra.mxu0 %v173
    %260 = vmatprep.subr.bf16.mxu0 0
    %261 = vmatpush1.bf16.msra.mxu0 %v176
    %262 = vmatprep.subr.bf16.mxu0 0
    %263 = vmatpush1.bf16.msra.mxu0 %v179
    %264 = vmatprep.subr.bf16.mxu0 0
    %265 = vmatpush1.bf16.msra.mxu0 %v182
    %266 = vmatprep.subr.bf16.mxu0 0
    %267 = vmatpush1.bf16.msra.mxu0 0
    %268 = vmatprep.subr.bf16.mxu0 0
    %269 = vmatpush1.bf16.msra.mxu0 0
    %270 = vmatprep.subr.bf16.mxu0 0
    %271 = vmatpush1.bf16.msra.mxu0 0
    %272 = vmatprep.subr.bf16.mxu0 0
    %273 = vmatpush1.bf16.msra.mxu0 0
    %274 = vmatprep.subr.bf16.mxu0 0
    %275 = vmatpush1.bf16.msra.mxu0 0
    %276 = vmatprep.subr.bf16.mxu0 0
    %277 = vmatpush1.bf16.msra.mxu0 0
    %278 = vmatprep.subr.bf16.mxu0 0
    %279 = vmatpush1.bf16.msra.mxu0 0
    %280 = vmatprep.subr.bf16.mxu0 0
    %281 = vmatpush1.bf16.msra.mxu0 0
    %282 = vmatprep.mubr.bf16.mxu0 0
    %283 = vmatmul.mubr.bf16.gmra.mrb[0].mxu0 %v77
    %v284 = vpop.f32.mrb[0].mxu0
    %v285 = vadd.f32 %v69, %v284
    %v286 = vpop.f32.mrb[0].mxu0
    %v287 = vpop.f32.mrb[0].mxu0
    %v288 = vadd.f32 %v69, %v287
    %v289 = vpop.f32.mrb[0].mxu0
    %290 = vdwg.mxu0
    %v291 = vld [vmem:[%s3] sm:$0xf]
    %v292 = vld [vmem:[%s3 + $0x4] sm:$0xf]
    %v293 = vld [vmem:[%s3 + $0x8] sm:$0xf]
    %v294 = vld [vmem:[%s3 + $0xc] sm:$0xf]
    %v295 = vld [vmem:[%s3 + $0x10] sm:$0xf]
    %v296 = vld [vmem:[%s3 + $0x14] sm:$0xf]
    %v297 = vld [vmem:[%s3 + $0x18] sm:$0xf]
    %v298 = vld [vmem:[%s3 + $0x1c] sm:$0xf]
    %v299 = vld [vmem:[%s3 + $0x20] sm:$0xf]
    %v300 = vld [vmem:[%s3 + $0x24] sm:$0xf]
    %v301 = vld [vmem:[%s3 + $0x28] sm:$0xf]
    %v302 = vld [vmem:[%s3 + $0x2c] sm:$0xf]
    %v303 = vld [vmem:[%s3 + $0x30] sm:$0xf]
    %v304 = vld [vmem:[%s3 + $0x34] sm:$0xf]
    %v305 = vld [vmem:[%s3 + $0x38] sm:$0xf]
    %v306 = vld [vmem:[%s3 + $0x3c] sm:$0xf]
    %v307 = vld [vmem:[%s4] sm:$0x1]
    %v309 = vlaneseq
    %v310 = vshrl.u32 %v309, 7
    %v311 = vsub.s32 0, %v310
    %v312 = vrot.slane %v307, %v311
    %v314 = vpack.c.bf16 %v242, %v242
    %v315 = vpack.c.bf16 %v244, %v244
    %v316 = vpack.c.bf16 %v285, %v285
    %vm317 = vcmask 261120
    %v319 = vsel %vm317, %v314, 0
    %v322 = vsel %vm317, %v315, 0
    %324 = vmatprep.subr.bf16.mxu0 0
    %325 = vmatpush1.bf16.xpose.msra.mxu0 %v322
    %326 = vmatprep.subr.bf16.mxu0 0
    %327 = vmatpush1.bf16.xpose.msra.mxu0 0
    %328 = vmatprep.subr.bf16.mxu0 0
    %329 = vmatpush1.bf16.xpose.msra.mxu0 0
    %330 = vmatprep.subr.bf16.mxu0 0
    %331 = vmatpush1.bf16.xpose.msra.mxu0 0
    %332 = vmatprep.subr.bf16.mxu0 0
    %333 = vmatpush1.bf16.xpose.msra.mxu0 0
    %334 = vmatprep.subr.bf16.mxu0 0
    %335 = vmatpush1.bf16.xpose.msra.mxu0 0
    %336 = vmatprep.subr.bf16.mxu0 0
    %337 = vmatpush1.bf16.xpose.msra.mxu0 0
    %338 = vmatprep.subr.bf16.mxu0 0
    %339 = vmatpush1.bf16.xpose.msra.mxu0 0
    %340 = vmatprep.subr.bf16.mxu0 0
    %341 = vmatpush1.bf16.xpose.msra.mxu0 0
    %342 = vmatprep.subr.bf16.mxu0 0
    %343 = vmatpush1.bf16.xpose.msra.mxu0 0
    %344 = vmatprep.subr.bf16.mxu0 0
    %345 = vmatpush1.bf16.xpose.msra.mxu0 0
    %346 = vmatprep.subr.bf16.mxu0 0
    %347 = vmatpush1.bf16.xpose.msra.mxu0 0
    %348 = vmatprep.subr.bf16.mxu0 0
    %349 = vmatpush1.bf16.xpose.msra.mxu0 0
    %350 = vmatprep.subr.bf16.mxu0 0
    %351 = vmatpush1.bf16.xpose.msra.mxu0 0
    %352 = vmatprep.subr.bf16.mxu0 0
    %353 = vmatpush1.bf16.xpose.msra.mxu0 0
    %354 = vmatprep.subr.bf16.mxu0 0
    %355 = vmatpush1.bf16.xpose.msra.mxu0 0
    %356 = vmatprep.mubr.bf16.mxu0 0
    %357 = vmatmul.mubr.bf16.gmra.mrb[0].mxu0 %v319
    %v358 = vpop.f32.mrb[0].mxu0
    %v359 = vadd.f32 0.0, %v358
    %v360 = vpop.f32.mrb[0].mxu0
    %v361 = vpop.f32.mrb[0].mxu0
    %v362 = vpop.f32.mrb[0].mxu0
    %363 = vdwg.mxu0
    %vm364 = vcmask 64512
    %v365 = vsel %vm364, %v359, -inf
    %366 = vmax.xlane.f32.xlu0 %v365
    %v367 = vpop.xlane.xlu0 %366
    %v368 = vsub.f32 %v359, %v367
    %v369 = vmul.f32 %v368, 1.442695
    %v370 = vpow.pop %v369
    %v371 = vsel %vm364, %v370, 0.0
    %372 = vadd.xlane.f32.xlu0 %v371
    %v373 = vpop.xlane.xlu0 %372
    %v374 = vrcp.pop %v373
    %v375 = vmul.f32 %v370, %v374
    %v376 = vpack.c.bf16 %v375, %v375
    %v378 = vsel %vm364, %v376, 0
    %vm380 = vcmask 1043456
    %v382 = vsel %vm380, %v316, 0
    %384 = vmatprep.subr.bf16.mxu0 0
    %385 = vmatpush1.bf16.msra.mxu0 %v382
    %386 = vmatprep.subr.bf16.mxu0 0
    %387 = vmatpush1.bf16.msra.mxu0 0
    %388 = vmatprep.subr.bf16.mxu0 0
    %389 = vmatpush1.bf16.msra.mxu0 0
    %390 = vmatprep.subr.bf16.mxu0 0
    %391 = vmatpush1.bf16.msra.mxu0 0
    %392 = vmatprep.subr.bf16.mxu0 0
    %393 = vmatpush1.bf16.msra.mxu0 0
    %394 = vmatprep.subr.bf16.mxu0 0
    %395 = vmatpush1.bf16.msra.mxu0 0
    %396 = vmatprep.subr.bf16.mxu0 0
    %397 = vmatpush1.bf16.msra.mxu0 0
    %398 = vmatprep.subr.bf16.mxu0 0
    %399 = vmatpush1.bf16.msra.mxu0 0
    %400 = vmatprep.subr.bf16.mxu0 0
    %401 = vmatpush1.bf16.msra.mxu0 0
    %402 = vmatprep.subr.bf16.mxu0 0
    %403 = vmatpush1.bf16.msra.mxu0 0
    %404 = vmatprep.subr.bf16.mxu0 0
    %405 = vmatpush1.bf16.msra.mxu0 0
    %406 = vmatprep.subr.bf16.mxu0 0
    %407 = vmatpush1.bf16.msra.mxu0 0
    %408 = vmatprep.subr.bf16.mxu0 0
    %409 = vmatpush1.bf16.msra.mxu0 0
    %410 = vmatprep.subr.bf16.mxu0 0
    %411 = vmatpush1.bf16.msra.mxu0 0
    %412 = vmatprep.subr.bf16.mxu0 0
    %413 = vmatpush1.bf16.msra.mxu0 0
    %414 = vmatprep.subr.bf16.mxu0 0
    %415 = vmatpush1.bf16.msra.mxu0 0
    %416 = vmatprep.mubr.bf16.mxu0 0
    %417 = vmatmul.mubr.bf16.gmra.mrb[0].mxu0 %v378
    %v418 = vpop.f32.mrb[0].mxu0
    %v419 = vadd.f32 0.0, %v418
    %v420 = vpop.f32.mrb[0].mxu0
    %v421 = vpop.f32.mrb[0].mxu0
    %v422 = vpop.f32.mrb[0].mxu0
    %423 = vdwg.mxu0
    %v424 = vpack.c.bf16 %v419, %v419
    %v429 = vunpack.c.l.b16 %v291
    %v430 = vunpack.c.l.b16 %v292
    %v431 = vunpack.c.l.b16 %v293
    %v432 = vunpack.c.l.b16 %v294
    %v433 = vpack.c.b16 %v430, %v429
    %v434 = vpack.c.b16 %v432, %v431
    %v438 = vsel %vm317, %v424, 0
    %440 = vmatprep.subr.bf16.mxu0 0
    %441 = vmatpush1.bf16.msra.mxu0 %v433
    %442 = vmatprep.subr.bf16.mxu0 0
    %443 = vmatpush1.bf16.msra.mxu0 %v434
    %444 = vmatprep.subr.bf16.mxu0 0
    %445 = vmatpush1.bf16.msra.mxu0 0
    %446 = vmatprep.subr.bf16.mxu0 0
    %447 = vmatpush1.bf16.msra.mxu0 0
    %448 = vmatprep.subr.bf16.mxu0 0
    %449 = vmatpush1.bf16.msra.mxu0 0
    %450 = vmatprep.subr.bf16.mxu0 0
    %451 = vmatpush1.bf16.msra.mxu0 0
    %452 = vmatprep.subr.bf16.mxu0 0
    %453 = vmatpush1.bf16.msra.mxu0 0
    %454 = vmatprep.subr.bf16.mxu0 0
    %455 = vmatpush1.bf16.msra.mxu0 0
    %456 = vmatprep.subr.bf16.mxu0 0
    %457 = vmatpush1.bf16.msra.mxu0 0
    %458 = vmatprep.subr.bf16.mxu0 0
    %459 = vmatpush1.bf16.msra.mxu0 0
    %460 = vmatprep.subr.bf16.mxu0 0
    %461 = vmatpush1.bf16.msra.mxu0 0
    %462 = vmatprep.subr.bf16.mxu0 0
    %463 = vmatpush1.bf16.msra.mxu0 0
    %464 = vmatprep.subr.bf16.mxu0 0
    %465 = vmatpush1.bf16.msra.mxu0 0
    %466 = vmatprep.subr.bf16.mxu0 0
    %467 = vmatpush1.bf16.msra.mxu0 0
    %468 = vmatprep.subr.bf16.mxu0 0
    %469 = vmatpush1.bf16.msra.mxu0 0
    %470 = vmatprep.subr.bf16.mxu0 0
    %471 = vmatpush1.bf16.msra.mxu0 0
    %472 = vmatprep.mubr.bf16.mxu0 0
    %473 = vmatmul.mubr.bf16.gmra.mrb[0].mxu0 %v438
    %v474 = vpop.f32.mrb[0].mxu0
    %v475 = vadd.f32 0.0, %v474
    %v476 = vpop.f32.mrb[0].mxu0
    %v477 = vpop.f32.mrb[0].mxu0
    %v478 = vpop.f32.mrb[0].mxu0
    %479 = vdwg.mxu0
    %v480 = vadd.f32 %v312, %v475
    %482 = vrot.lane.b32.xlu0 %v314, 96
    %v483 = vpop.permute.xlu0 %482
    %485 = vrot.lane.b32.xlu0 %v315, 96
    %v486 = vpop.permute.xlu0 %485
    %v488 = vsel %vm317, %v483, 0
    %v491 = vsel %vm317, %v486, 0
    %493 = vmatprep.subr.bf16.mxu0 0
    %494 = vmatpush1.bf16.xpose.msra.mxu0 %v491
    %495 = vmatprep.subr.bf16.mxu0 0
    %496 = vmatpush1.bf16.xpose.msra.mxu0 0
    %497 = vmatprep.subr.bf16.mxu0 0
    %498 = vmatpush1.bf16.xpose.msra.mxu0 0
    %499 = vmatprep.subr.bf16.mxu0 0
    %500 = vmatpush1.bf16.xpose.msra.mxu0 0
    %501 = vmatprep.subr.bf16.mxu0 0
    %502 = vmatpush1.bf16.xpose.msra.mxu0 0
    %503 = vmatprep.subr.bf16.mxu0 0
    %504 = vmatpush1.bf16.xpose.msra.mxu0 0
    %505 = vmatprep.subr.bf16.mxu0 0
    %506 = vmatpush1.bf16.xpose.msra.mxu0 0
    %507 = vmatprep.subr.bf16.mxu0 0
    %508 = vmatpush1.bf16.xpose.msra.mxu0 0
    %509 = vmatprep.subr.bf16.mxu0 0
    %510 = vmatpush1.bf16.xpose.msra.mxu0 0
    %511 = vmatprep.subr.bf16.mxu0 0
    %512 = vmatpush1.bf16.xpose.msra.mxu0 0
    %513 = vmatprep.subr.bf16.mxu0 0
    %514 = vmatpush1.bf16.xpose.msra.mxu0 0
    %515 = vmatprep.subr.bf16.mxu0 0
    %516 = vmatpush1.bf16.xpose.msra.mxu0 0
    %517 = vmatprep.subr.bf16.mxu0 0
    %518 = vmatpush1.bf16.xpose.msra.mxu0 0
    %519 = vmatprep.subr.bf16.mxu0 0
    %520 = vmatpush1.bf16.xpose.msra.mxu0 0
    %521 = vmatprep.subr.bf16.mxu0 0
    %522 = vmatpush1.bf16.xpose.msra.mxu0 0
    %523 = vmatprep.subr.bf16.mxu0 0
    %524 = vmatpush1.bf16.xpose.msra.mxu0 0
    %525 = vmatprep.mubr.bf16.mxu0 0
    %526 = vmatmul.mubr.bf16.gmra.mrb[0].mxu0 %v488
    %v527 = vpop.f32.mrb[0].mxu0
    %v528 = vadd.f32 0.0, %v527
    %v529 = vpop.f32.mrb[0].mxu0
    %v530 = vpop.f32.mrb[0].mxu0
    %v531 = vpop.f32.mrb[0].mxu0
    %532 = vdwg.mxu0
    %v533 = vsel %vm364, %v528, -inf
    %534 = vmax.xlane.f32.xlu0 %v533
    %v535 = vpop.xlane.xlu0 %534
    %v536 = vsub.f32 %v528, %v535
    %v537 = vmul.f32 %v536, 1.442695
    %v538 = vpow.pop %v537
    %v539 = vsel %vm364, %v538, 0.0
    %540 = vadd.xlane.f32.xlu0 %v539
    %v541 = vpop.xlane.xlu0 %540
    %v542 = vrcp.pop %v541
    %v543 = vmul.f32 %v538, %v542
    %v544 = vpack.c.bf16 %v543, %v543
    %546 = vrot.lane.b32.xlu0 %v316, 96
    %v547 = vpop.permute.xlu0 %546
    %v549 = vsel %vm364, %v544, 0
    %v552 = vsel %vm380, %v547, 0
    %554 = vmatprep.subr.bf16.mxu0 0
    %555 = vmatpush1.bf16.msra.mxu0 %v552
    %556 = vmatprep.subr.bf16.mxu0 0
    %557 = vmatpush1.bf16.msra.mxu0 0
    %558 = vmatprep.subr.bf16.mxu0 0
    %559 = vmatpush1.bf16.msra.mxu0 0
    %560 = vmatprep.subr.bf16.mxu0 0
    %561 = vmatpush1.bf16.msra.mxu0 0
    %562 = vmatprep.subr.bf16.mxu0 0
    %563 = vmatpush1.bf16.msra.mxu0 0
    %564 = vmatprep.subr.bf16.mxu0 0
    %565 = vmatpush1.bf16.msra.mxu0 0
    %566 = vmatprep.subr.bf16.mxu0 0
    %567 = vmatpush1.bf16.msra.mxu0 0
    %568 = vmatprep.subr.bf16.mxu0 0
    %569 = vmatpush1.bf16.msra.mxu0 0
    %570 = vmatprep.subr.bf16.mxu0 0
    %571 = vmatpush1.bf16.msra.mxu0 0
    %572 = vmatprep.subr.bf16.mxu0 0
    %573 = vmatpush1.bf16.msra.mxu0 0
    %574 = vmatprep.subr.bf16.mxu0 0
    %575 = vmatpush1.bf16.msra.mxu0 0
    %576 = vmatprep.subr.bf16.mxu0 0
    %577 = vmatpush1.bf16.msra.mxu0 0
    %578 = vmatprep.subr.bf16.mxu0 0
    %579 = vmatpush1.bf16.msra.mxu0 0
    %580 = vmatprep.subr.bf16.mxu0 0
    %581 = vmatpush1.bf16.msra.mxu0 0
    %582 = vmatprep.subr.bf16.mxu0 0
    %583 = vmatpush1.bf16.msra.mxu0 0
    %584 = vmatprep.subr.bf16.mxu0 0
    %585 = vmatpush1.bf16.msra.mxu0 0
    %586 = vmatprep.mubr.bf16.mxu0 0
    %587 = vmatmul.mubr.bf16.gmra.mrb[0].mxu0 %v549
    %v588 = vpop.f32.mrb[0].mxu0
    %v589 = vadd.f32 0.0, %v588
    %v590 = vpop.f32.mrb[0].mxu0
    %v591 = vpop.f32.mrb[0].mxu0
    %v592 = vpop.f32.mrb[0].mxu0
    %593 = vdwg.mxu0
    %v594 = vpack.c.bf16 %v589, %v589
    %v599 = vunpack.c.l.b16 %v295
    %v600 = vunpack.c.l.b16 %v296
    %v601 = vunpack.c.l.b16 %v297
    %v602 = vunpack.c.l.b16 %v298
    %v603 = vpack.c.b16 %v600, %v599
    %v604 = vpack.c.b16 %v602, %v601
    %v608 = vsel %vm317, %v594, 0
    %610 = vmatprep.subr.bf16.mxu0 0
    %611 = vmatpush1.bf16.msra.mxu0 %v603
    %612 = vmatprep.subr.bf16.mxu0 0
    %613 = vmatpush1.bf16.msra.mxu0 %v604
    %614 = vmatprep.subr.bf16.mxu0 0
    %615 = vmatpush1.bf16.msra.mxu0 0
    %616 = vmatprep.subr.bf16.mxu0 0
    %617 = vmatpush1.bf16.msra.mxu0 0
    %618 = vmatprep.subr.bf16.mxu0 0
    %619 = vmatpush1.bf16.msra.mxu0 0
    %620 = vmatprep.subr.bf16.mxu0 0
    %621 = vmatpush1.bf16.msra.mxu0 0
    %622 = vmatprep.subr.bf16.mxu0 0
    %623 = vmatpush1.bf16.msra.mxu0 0
    %624 = vmatprep.subr.bf16.mxu0 0
    %625 = vmatpush1.bf16.msra.mxu0 0
    %626 = vmatprep.subr.bf16.mxu0 0
    %627 = vmatpush1.bf16.msra.mxu0 0
    %628 = vmatprep.subr.bf16.mxu0 0
    %629 = vmatpush1.bf16.msra.mxu0 0
    %630 = vmatprep.subr.bf16.mxu0 0
    %631 = vmatpush1.bf16.msra.mxu0 0
    %632 = vmatprep.subr.bf16.mxu0 0
    %633 = vmatpush1.bf16.msra.mxu0 0
    %634 = vmatprep.subr.bf16.mxu0 0
    %635 = vmatpush1.bf16.msra.mxu0 0
    %636 = vmatprep.subr.bf16.mxu0 0
    %637 = vmatpush1.bf16.msra.mxu0 0
    %638 = vmatprep.subr.bf16.mxu0 0
    %639 = vmatpush1.bf16.msra.mxu0 0
    %640 = vmatprep.subr.bf16.mxu0 0
    %641 = vmatpush1.bf16.msra.mxu0 0
    %642 = vmatprep.mubr.bf16.mxu0 0
    %643 = vmatmul.mubr.bf16.gmra.mrb[0].mxu0 %v608
    %v644 = vpop.f32.mrb[0].mxu0
    %v645 = vadd.f32 0.0, %v644
    %v646 = vpop.f32.mrb[0].mxu0
    %v647 = vpop.f32.mrb[0].mxu0
    %v648 = vpop.f32.mrb[0].mxu0
    %649 = vdwg.mxu0
    %v650 = vadd.f32 %v480, %v645
    %651 = vrot.lane.b32.xlu0 %v314, 64
    %v652 = vpop.permute.xlu0 %651
    %653 = vrot.lane.b32.xlu0 %v315, 64
    %v654 = vpop.permute.xlu0 %653
    %v656 = vsel %vm317, %v652, 0
    %v659 = vsel %vm317, %v654, 0
    %661 = vmatprep.subr.bf16.mxu0 0
    %662 = vmatpush1.bf16.xpose.msra.mxu0 %v659
    %663 = vmatprep.subr.bf16.mxu0 0
    %664 = vmatpush1.bf16.xpose.msra.mxu0 0
    %665 = vmatprep.subr.bf16.mxu0 0
    %666 = vmatpush1.bf16.xpose.msra.mxu0 0
    %667 = vmatprep.subr.bf16.mxu0 0
    %668 = vmatpush1.bf16.xpose.msra.mxu0 0
    %669 = vmatprep.subr.bf16.mxu0 0
    %670 = vmatpush1.bf16.xpose.msra.mxu0 0
    %671 = vmatprep.subr.bf16.mxu0 0
    %672 = vmatpush1.bf16.xpose.msra.mxu0 0
    %673 = vmatprep.subr.bf16.mxu0 0
    %674 = vmatpush1.bf16.xpose.msra.mxu0 0
    %675 = vmatprep.subr.bf16.mxu0 0
    %676 = vmatpush1.bf16.xpose.msra.mxu0 0
    %677 = vmatprep.subr.bf16.mxu0 0
    %678 = vmatpush1.bf16.xpose.msra.mxu0 0
    %679 = vmatprep.subr.bf16.mxu0 0
    %680 = vmatpush1.bf16.xpose.msra.mxu0 0
    %681 = vmatprep.subr.bf16.mxu0 0
    %682 = vmatpush1.bf16.xpose.msra.mxu0 0
    %683 = vmatprep.subr.bf16.mxu0 0
    %684 = vmatpush1.bf16.xpose.msra.mxu0 0
    %685 = vmatprep.subr.bf16.mxu0 0
    %686 = vmatpush1.bf16.xpose.msra.mxu0 0
    %687 = vmatprep.subr.bf16.mxu0 0
    %688 = vmatpush1.bf16.xpose.msra.mxu0 0
    %689 = vmatprep.subr.bf16.mxu0 0
    %690 = vmatpush1.bf16.xpose.msra.mxu0 0
    %691 = vmatprep.subr.bf16.mxu0 0
    %692 = vmatpush1.bf16.xpose.msra.mxu0 0
    %693 = vmatprep.mubr.bf16.mxu0 0
    %694 = vmatmul.mubr.bf16.gmra.mrb[0].mxu0 %v656
    %v695 = vpop.f32.mrb[0].mxu0
    %v696 = vadd.f32 0.0, %v695
    %v697 = vpop.f32.mrb[0].mxu0
    %v698 = vpop.f32.mrb[0].mxu0
    %v699 = vpop.f32.mrb[0].mxu0
    %700 = vdwg.mxu0
    %v701 = vsel %vm364, %v696, -inf
    %702 = vmax.xlane.f32.xlu0 %v701
    %v703 = vpop.xlane.xlu0 %702
    %v704 = vsub.f32 %v696, %v703
    %v705 = vmul.f32 %v704, 1.442695
    %v706 = vpow.pop %v705
    %v707 = vsel %vm364, %v706, 0.0
    %708 = vadd.xlane.f32.xlu0 %v707
    %v709 = vpop.xlane.xlu0 %708
    %v710 = vrcp.pop %v709
    %v711 = vmul.f32 %v706, %v710
    %v712 = vpack.c.bf16 %v711, %v711
    %713 = vrot.lane.b32.xlu0 %v316, 64
    %v714 = vpop.permute.xlu0 %713
    %v716 = vsel %vm364, %v712, 0
    %v719 = vsel %vm380, %v714, 0
    %721 = vmatprep.subr.bf16.mxu0 0
    %722 = vmatpush1.bf16.msra.mxu0 %v719
    %723 = vmatprep.subr.bf16.mxu0 0
    %724 = vmatpush1.bf16.msra.mxu0 0
    %725 = vmatprep.subr.bf16.mxu0 0
    %726 = vmatpush1.bf16.msra.mxu0 0
    %727 = vmatprep.subr.bf16.mxu0 0
    %728 = vmatpush1.bf16.msra.mxu0 0
    %729 = vmatprep.subr.bf16.mxu0 0
    %730 = vmatpush1.bf16.msra.mxu0 0
    %731 = vmatprep.subr.bf16.mxu0 0
    %732 = vmatpush1.bf16.msra.mxu0 0
    %733 = vmatprep.subr.bf16.mxu0 0
    %734 = vmatpush1.bf16.msra.mxu0 0
    %735 = vmatprep.subr.bf16.mxu0 0
    %736 = vmatpush1.bf16.msra.mxu0 0
    %737 = vmatprep.subr.bf16.mxu0 0
    %738 = vmatpush1.bf16.msra.mxu0 0
    %739 = vmatprep.subr.bf16.mxu0 0
    %740 = vmatpush1.bf16.msra.mxu0 0
    %741 = vmatprep.subr.bf16.mxu0 0
    %742 = vmatpush1.bf16.msra.mxu0 0
    %743 = vmatprep.subr.bf16.mxu0 0
    %744 = vmatpush1.bf16.msra.mxu0 0
    %745 = vmatprep.subr.bf16.mxu0 0
    %746 = vmatpush1.bf16.msra.mxu0 0
    %747 = vmatprep.subr.bf16.mxu0 0
    %748 = vmatpush1.bf16.msra.mxu0 0
    %749 = vmatprep.subr.bf16.mxu0 0
    %750 = vmatpush1.bf16.msra.mxu0 0
    %751 = vmatprep.subr.bf16.mxu0 0
    %752 = vmatpush1.bf16.msra.mxu0 0
    %753 = vmatprep.mubr.bf16.mxu0 0
    %754 = vmatmul.mubr.bf16.gmra.mrb[0].mxu0 %v716
    %v755 = vpop.f32.mrb[0].mxu0
    %v756 = vadd.f32 0.0, %v755
    %v757 = vpop.f32.mrb[0].mxu0
    %v758 = vpop.f32.mrb[0].mxu0
    %v759 = vpop.f32.mrb[0].mxu0
    %760 = vdwg.mxu0
    %v761 = vpack.c.bf16 %v756, %v756
    %v766 = vunpack.c.l.b16 %v299
    %v767 = vunpack.c.l.b16 %v300
    %v768 = vunpack.c.l.b16 %v301
    %v769 = vunpack.c.l.b16 %v302
    %v770 = vpack.c.b16 %v767, %v766
    %v771 = vpack.c.b16 %v769, %v768
    %v775 = vsel %vm317, %v761, 0
    %777 = vmatprep.subr.bf16.mxu0 0
    %778 = vmatpush1.bf16.msra.mxu0 %v770
    %779 = vmatprep.subr.bf16.mxu0 0
    %780 = vmatpush1.bf16.msra.mxu0 %v771
    %781 = vmatprep.subr.bf16.mxu0 0
    %782 = vmatpush1.bf16.msra.mxu0 0
    %783 = vmatprep.subr.bf16.mxu0 0
    %784 = vmatpush1.bf16.msra.mxu0 0
    %785 = vmatprep.subr.bf16.mxu0 0
    %786 = vmatpush1.bf16.msra.mxu0 0
    %787 = vmatprep.subr.bf16.mxu0 0
    %788 = vmatpush1.bf16.msra.mxu0 0
    %789 = vmatprep.subr.bf16.mxu0 0
    %790 = vmatpush1.bf16.msra.mxu0 0
    %791 = vmatprep.subr.bf16.mxu0 0
    %792 = vmatpush1.bf16.msra.mxu0 0
    %793 = vmatprep.subr.bf16.mxu0 0
    %794 = vmatpush1.bf16.msra.mxu0 0
    %795 = vmatprep.subr.bf16.mxu0 0
    %796 = vmatpush1.bf16.msra.mxu0 0
    %797 = vmatprep.subr.bf16.mxu0 0
    %798 = vmatpush1.bf16.msra.mxu0 0
    %799 = vmatprep.subr.bf16.mxu0 0
    %800 = vmatpush1.bf16.msra.mxu0 0
    %801 = vmatprep.subr.bf16.mxu0 0
    %802 = vmatpush1.bf16.msra.mxu0 0
    %803 = vmatprep.subr.bf16.mxu0 0
    %804 = vmatpush1.bf16.msra.mxu0 0
    %805 = vmatprep.subr.bf16.mxu0 0
    %806 = vmatpush1.bf16.msra.mxu0 0
    %807 = vmatprep.subr.bf16.mxu0 0
    %808 = vmatpush1.bf16.msra.mxu0 0
    %809 = vmatprep.mubr.bf16.mxu0 0
    %810 = vmatmul.mubr.bf16.gmra.mrb[0].mxu0 %v775
    %v811 = vpop.f32.mrb[0].mxu0
    %v812 = vadd.f32 0.0, %v811
    %v813 = vpop.f32.mrb[0].mxu0
    %v814 = vpop.f32.mrb[0].mxu0
    %v815 = vpop.f32.mrb[0].mxu0
    %816 = vdwg.mxu0
    %v817 = vadd.f32 %v650, %v812
    %818 = vrot.lane.b32.xlu0 %v314, 32
    %v819 = vpop.permute.xlu0 %818
    %820 = vrot.lane.b32.xlu0 %v315, 32
    %v821 = vpop.permute.xlu0 %820
    %v823 = vsel %vm317, %v819, 0
    %v826 = vsel %vm317, %v821, 0
    %828 = vmatprep.subr.bf16.mxu0 0
    %829 = vmatpush1.bf16.xpose.msra.mxu0 %v826
    %830 = vmatprep.subr.bf16.mxu0 0
    %831 = vmatpush1.bf16.xpose.msra.mxu0 0
    %832 = vmatprep.subr.bf16.mxu0 0
    %833 = vmatpush1.bf16.xpose.msra.mxu0 0
    %834 = vmatprep.subr.bf16.mxu0 0
    %835 = vmatpush1.bf16.xpose.msra.mxu0 0
    %836 = vmatprep.subr.bf16.mxu0 0
    %837 = vmatpush1.bf16.xpose.msra.mxu0 0
    %838 = vmatprep.subr.bf16.mxu0 0
    %839 = vmatpush1.bf16.xpose.msra.mxu0 0
    %840 = vmatprep.subr.bf16.mxu0 0
    %841 = vmatpush1.bf16.xpose.msra.mxu0 0
    %842 = vmatprep.subr.bf16.mxu0 0
    %843 = vmatpush1.bf16.xpose.msra.mxu0 0
    %844 = vmatprep.subr.bf16.mxu0 0
    %845 = vmatpush1.bf16.xpose.msra.mxu0 0
    %846 = vmatprep.subr.bf16.mxu0 0
    %847 = vmatpush1.bf16.xpose.msra.mxu0 0
    %848 = vmatprep.subr.bf16.mxu0 0
    %849 = vmatpush1.bf16.xpose.msra.mxu0 0
    %850 = vmatprep.subr.bf16.mxu0 0
    %851 = vmatpush1.bf16.xpose.msra.mxu0 0
    %852 = vmatprep.subr.bf16.mxu0 0
    %853 = vmatpush1.bf16.xpose.msra.mxu0 0
    %854 = vmatprep.subr.bf16.mxu0 0
    %855 = vmatpush1.bf16.xpose.msra.mxu0 0
    %856 = vmatprep.subr.bf16.mxu0 0
    %857 = vmatpush1.bf16.xpose.msra.mxu0 0
    %858 = vmatprep.subr.bf16.mxu0 0
    %859 = vmatpush1.bf16.xpose.msra.mxu0 0
    %860 = vmatprep.mubr.bf16.mxu0 0
    %861 = vmatmul.mubr.bf16.gmra.mrb[0].mxu0 %v823
    %v862 = vpop.f32.mrb[0].mxu0
    %v863 = vadd.f32 0.0, %v862
    %v864 = vpop.f32.mrb[0].mxu0
    %v865 = vpop.f32.mrb[0].mxu0
    %v866 = vpop.f32.mrb[0].mxu0
    %867 = vdwg.mxu0
    %v868 = vsel %vm364, %v863, -inf
    %869 = vmax.xlane.f32.xlu0 %v868
    %v870 = vpop.xlane.xlu0 %869
    %v871 = vsub.f32 %v863, %v870
    %v872 = vmul.f32 %v871, 1.442695
    %v873 = vpow.pop %v872
    %v874 = vsel %vm364, %v873, 0.0
    %875 = vadd.xlane.f32.xlu0 %v874
    %v876 = vpop.xlane.xlu0 %875
    %v877 = vrcp.pop %v876
    %v878 = vmul.f32 %v873, %v877
    %v879 = vpack.c.bf16 %v878, %v878
    %880 = vrot.lane.b32.xlu0 %v316, 32
    %v881 = vpop.permute.xlu0 %880
    %v883 = vsel %vm364, %v879, 0
    %v886 = vsel %vm380, %v881, 0
    %888 = vmatprep.subr.bf16.mxu0 0
    %889 = vmatpush1.bf16.msra.mxu0 %v886
    %890 = vmatprep.subr.bf16.mxu0 0
    %891 = vmatpush1.bf16.msra.mxu0 0
    %892 = vmatprep.subr.bf16.mxu0 0
    %893 = vmatpush1.bf16.msra.mxu0 0
    %894 = vmatprep.subr.bf16.mxu0 0
    %895 = vmatpush1.bf16.msra.mxu0 0
    %896 = vmatprep.subr.bf16.mxu0 0
    %897 = vmatpush1.bf16.msra.mxu0 0
    %898 = vmatprep.subr.bf16.mxu0 0
    %899 = vmatpush1.bf16.msra.mxu0 0
    %900 = vmatprep.subr.bf16.mxu0 0
    %901 = vmatpush1.bf16.msra.mxu0 0
    %902 = vmatprep.subr.bf16.mxu0 0
    %903 = vmatpush1.bf16.msra.mxu0 0
    %904 = vmatprep.subr.bf16.mxu0 0
    %905 = vmatpush1.bf16.msra.mxu0 0
    %906 = vmatprep.subr.bf16.mxu0 0
    %907 = vmatpush1.bf16.msra.mxu0 0
    %908 = vmatprep.subr.bf16.mxu0 0
    %909 = vmatpush1.bf16.msra.mxu0 0
    %910 = vmatprep.subr.bf16.mxu0 0
    %911 = vmatpush1.bf16.msra.mxu0 0
    %912 = vmatprep.subr.bf16.mxu0 0
    %913 = vmatpush1.bf16.msra.mxu0 0
    %914 = vmatprep.subr.bf16.mxu0 0
    %915 = vmatpush1.bf16.msra.mxu0 0
    %916 = vmatprep.subr.bf16.mxu0 0
    %917 = vmatpush1.bf16.msra.mxu0 0
    %918 = vmatprep.subr.bf16.mxu0 0
    %919 = vmatpush1.bf16.msra.mxu0 0
    %920 = vmatprep.mubr.bf16.mxu0 0
    %921 = vmatmul.mubr.bf16.gmra.mrb[0].mxu0 %v883
    %v922 = vpop.f32.mrb[0].mxu0
    %v923 = vadd.f32 0.0, %v922
    %v924 = vpop.f32.mrb[0].mxu0
    %v925 = vpop.f32.mrb[0].mxu0
    %v926 = vpop.f32.mrb[0].mxu0
    %927 = vdwg.mxu0
    %v928 = vpack.c.bf16 %v923, %v923
    %v933 = vunpack.c.l.b16 %v303
    %v934 = vunpack.c.l.b16 %v304
    %v935 = vunpack.c.l.b16 %v305
    %v936 = vunpack.c.l.b16 %v306
    %v937 = vpack.c.b16 %v934, %v933
    %v938 = vpack.c.b16 %v936, %v935
    %v942 = vsel %vm317, %v928, 0
    %944 = vmatprep.subr.bf16.mxu0 0
    %945 = vmatpush1.bf16.msra.mxu0 %v937
    %946 = vmatprep.subr.bf16.mxu0 0
    %947 = vmatpush1.bf16.msra.mxu0 %v938
    %948 = vmatprep.subr.bf16.mxu0 0
    %949 = vmatpush1.bf16.msra.mxu0 0
    %950 = vmatprep.subr.bf16.mxu0 0
    %951 = vmatpush1.bf16.msra.mxu0 0
    %952 = vmatprep.subr.bf16.mxu0 0
    %953 = vmatpush1.bf16.msra.mxu0 0
    %954 = vmatprep.subr.bf16.mxu0 0
    %955 = vmatpush1.bf16.msra.mxu0 0
    %956 = vmatprep.subr.bf16.mxu0 0
    %957 = vmatpush1.bf16.msra.mxu0 0
    %958 = vmatprep.subr.bf16.mxu0 0
    %959 = vmatpush1.bf16.msra.mxu0 0
    %960 = vmatprep.subr.bf16.mxu0 0
    %961 = vmatpush1.bf16.msra.mxu0 0
    %962 = vmatprep.subr.bf16.mxu0 0
    %963 = vmatpush1.bf16.msra.mxu0 0
    %964 = vmatprep.subr.bf16.mxu0 0
    %965 = vmatpush1.bf16.msra.mxu0 0
    %966 = vmatprep.subr.bf16.mxu0 0
    %967 = vmatpush1.bf16.msra.mxu0 0
    %968 = vmatprep.subr.bf16.mxu0 0
    %969 = vmatpush1.bf16.msra.mxu0 0
    %970 = vmatprep.subr.bf16.mxu0 0
    %971 = vmatpush1.bf16.msra.mxu0 0
    %972 = vmatprep.subr.bf16.mxu0 0
    %973 = vmatpush1.bf16.msra.mxu0 0
    %974 = vmatprep.subr.bf16.mxu0 0
    %975 = vmatpush1.bf16.msra.mxu0 0
    %976 = vmatprep.mubr.bf16.mxu0 0
    %977 = vmatmul.mubr.bf16.gmra.mrb[0].mxu0 %v942
    %v978 = vpop.f32.mrb[0].mxu0
    %v979 = vadd.f32 0.0, %v978
    %v980 = vpop.f32.mrb[0].mxu0
    %v981 = vpop.f32.mrb[0].mxu0
    %v982 = vpop.f32.mrb[0].mxu0
    %983 = vdwg.mxu0
    %v984 = vadd.f32 %v817, %v979
    %985 = vst [vmem:[#allocation2] sm:$0xff] %v984
    %v986 = vpack.c.bf16 %v246, %v246
    %v987 = vpack.c.bf16 %v248, %v248
    %v988 = vpack.c.bf16 %v288, %v288
    %v990 = vsel %vm317, %v986, 0
    %v993 = vsel %vm317, %v987, 0
    %995 = vmatprep.subr.bf16.mxu0 0
    %996 = vmatpush1.bf16.xpose.msra.mxu0 %v993
    %997 = vmatprep.subr.bf16.mxu0 0
    %998 = vmatpush1.bf16.xpose.msra.mxu0 0
    %999 = vmatprep.subr.bf16.mxu0 0
    %1000 = vmatpush1.bf16.xpose.msra.mxu0 0
    %1001 = vmatprep.subr.bf16.mxu0 0
    %1002 = vmatpush1.bf16.xpose.msra.mxu0 0
    %1003 = vmatprep.subr.bf16.mxu0 0
    %1004 = vmatpush1.bf16.xpose.msra.mxu0 0
    %1005 = vmatprep.subr.bf16.mxu0 0
    %1006 = vmatpush1.bf16.xpose.msra.mxu0 0
    %1007 = vmatprep.subr.bf16.mxu0 0
    %1008 = vmatpush1.bf16.xpose.msra.mxu0 0
    %1009 = vmatprep.subr.bf16.mxu0 0
    %1010 = vmatpush1.bf16.xpose.msra.mxu0 0
    %1011 = vmatprep.subr.bf16.mxu0 0
    %1012 = vmatpush1.bf16.xpose.msra.mxu0 0
    %1013 = vmatprep.subr.bf16.mxu0 0
    %1014 = vmatpush1.bf16.xpose.msra.mxu0 0
    %1015 = vmatprep.subr.bf16.mxu0 0
    %1016 = vmatpush1.bf16.xpose.msra.mxu0 0
    %1017 = vmatprep.subr.bf16.mxu0 0
    %1018 = vmatpush1.bf16.xpose.msra.mxu0 0
    %1019 = vmatprep.subr.bf16.mxu0 0
    %1020 = vmatpush1.bf16.xpose.msra.mxu0 0
    %1021 = vmatprep.subr.bf16.mxu0 0
    %1022 = vmatpush1.bf16.xpose.msra.mxu0 0
    %1023 = vmatprep.subr.bf16.mxu0 0
    %1024 = vmatpush1.bf16.xpose.msra.mxu0 0
    %1025 = vmatprep.subr.bf16.mxu0 0
    %1026 = vmatpush1.bf16.xpose.msra.mxu0 0
    %1027 = vmatprep.mubr.bf16.mxu0 0
    %1028 = vmatmul.mubr.bf16.gmra.mrb[0].mxu0 %v990
    %v1029 = vpop.f32.mrb[0].mxu0
    %v1030 = vadd.f32 0.0, %v1029
    %v1031 = vpop.f32.mrb[0].mxu0
    %v1032 = vpop.f32.mrb[0].mxu0
    %v1033 = vpop.f32.mrb[0].mxu0
    %1034 = vdwg.mxu0
    %v1035 = vsel %vm364, %v1030, -inf
    %1036 = vmax.xlane.f32.xlu0 %v1035
    %v1037 = vpop.xlane.xlu0 %1036
    %v1038 = vsub.f32 %v1030, %v1037
    %v1039 = vmul.f32 %v1038, 1.442695
    %v1040 = vpow.pop %v1039
    %v1041 = vsel %vm364, %v1040, 0.0
    %1042 = vadd.xlane.f32.xlu0 %v1041
    %v1043 = vpop.xlane.xlu0 %1042
    %v1044 = vrcp.pop %v1043
    %v1045 = vmul.f32 %v1040, %v1044
    %v1046 = vpack.c.bf16 %v1045, %v1045
    %v1048 = vsel %vm364, %v1046, 0
    %v1051 = vsel %vm380, %v988, 0
    %1053 = vmatprep.subr.bf16.mxu0 0
    %1054 = vmatpush1.bf16.msra.mxu0 %v1051
    %1055 = vmatprep.subr.bf16.mxu0 0
    %1056 = vmatpush1.bf16.msra.mxu0 0
    %1057 = vmatprep.subr.bf16.mxu0 0
    %1058 = vmatpush1.bf16.msra.mxu0 0
    %1059 = vmatprep.subr.bf16.mxu0 0
    %1060 = vmatpush1.bf16.msra.mxu0 0
    %1061 = vmatprep.subr.bf16.mxu0 0
    %1062 = vmatpush1.bf16.msra.mxu0 0
    %1063 = vmatprep.subr.bf16.mxu0 0
    %1064 = vmatpush1.bf16.msra.mxu0 0
    %1065 = vmatprep.subr.bf16.mxu0 0
    %1066 = vmatpush1.bf16.msra.mxu0 0
    %1067 = vmatprep.subr.bf16.mxu0 0
    %1068 = vmatpush1.bf16.msra.mxu0 0
    %1069 = vmatprep.subr.bf16.mxu0 0
    %1070 = vmatpush1.bf16.msra.mxu0 0
    %1071 = vmatprep.subr.bf16.mxu0 0
    %1072 = vmatpush1.bf16.msra.mxu0 0
    %1073 = vmatprep.subr.bf16.mxu0 0
    %1074 = vmatpush1.bf16.msra.mxu0 0
    %1075 = vmatprep.subr.bf16.mxu0 0
    %1076 = vmatpush1.bf16.msra.mxu0 0
    %1077 = vmatprep.subr.bf16.mxu0 0
    %1078 = vmatpush1.bf16.msra.mxu0 0
    %1079 = vmatprep.subr.bf16.mxu0 0
    %1080 = vmatpush1.bf16.msra.mxu0 0
    %1081 = vmatprep.subr.bf16.mxu0 0
    %1082 = vmatpush1.bf16.msra.mxu0 0
    %1083 = vmatprep.subr.bf16.mxu0 0
    %1084 = vmatpush1.bf16.msra.mxu0 0
    %1085 = vmatprep.mubr.bf16.mxu0 0
    %1086 = vmatmul.mubr.bf16.gmra.mrb[0].mxu0 %v1048
    %v1087 = vpop.f32.mrb[0].mxu0
    %v1088 = vadd.f32 0.0, %v1087
    %v1089 = vpop.f32.mrb[0].mxu0
    %v1090 = vpop.f32.mrb[0].mxu0
    %v1091 = vpop.f32.mrb[0].mxu0
    %1092 = vdwg.mxu0
    %v1093 = vpack.c.bf16 %v1088, %v1088
    %v1095 = vsel %vm317, %v1093, 0
    %1097 = vmatprep.subr.bf16.mxu0 0
    %1098 = vmatpush1.bf16.msra.mxu0 %v433
    %1099 = vmatprep.subr.bf16.mxu0 0
    %1100 = vmatpush1.bf16.msra.mxu0 %v434
    %1101 = vmatprep.subr.bf16.mxu0 0
    %1102 = vmatpush1.bf16.msra.mxu0 0
    %1103 = vmatprep.subr.bf16.mxu0 0
    %1104 = vmatpush1.bf16.msra.mxu0 0
    %1105 = vmatprep.subr.bf16.mxu0 0
    %1106 = vmatpush1.bf16.msra.mxu0 0
    %1107 = vmatprep.subr.bf16.mxu0 0
    %1108 = vmatpush1.bf16.msra.mxu0 0
    %1109 = vmatprep.subr.bf16.mxu0 0
    %1110 = vmatpush1.bf16.msra.mxu0 0
    %1111 = vmatprep.subr.bf16.mxu0 0
    %1112 = vmatpush1.bf16.msra.mxu0 0
    %1113 = vmatprep.subr.bf16.mxu0 0
    %1114 = vmatpush1.bf16.msra.mxu0 0
    %1115 = vmatprep.subr.bf16.mxu0 0
    %1116 = vmatpush1.bf16.msra.mxu0 0
    %1117 = vmatprep.subr.bf16.mxu0 0
    %1118 = vmatpush1.bf16.msra.mxu0 0
    %1119 = vmatprep.subr.bf16.mxu0 0
    %1120 = vmatpush1.bf16.msra.mxu0 0
    %1121 = vmatprep.subr.bf16.mxu0 0
    %1122 = vmatpush1.bf16.msra.mxu0 0
    %1123 = vmatprep.subr.bf16.mxu0 0
    %1124 = vmatpush1.bf16.msra.mxu0 0
    %1125 = vmatprep.subr.bf16.mxu0 0
    %1126 = vmatpush1.bf16.msra.mxu0 0
    %1127 = vmatprep.subr.bf16.mxu0 0
    %1128 = vmatpush1.bf16.msra.mxu0 0
    %1129 = vmatprep.mubr.bf16.mxu0 0
    %1130 = vmatmul.mubr.bf16.gmra.mrb[0].mxu0 %v1095
    %v1131 = vpop.f32.mrb[0].mxu0
    %v1132 = vadd.f32 0.0, %v1131
    %v1133 = vpop.f32.mrb[0].mxu0
    %v1134 = vpop.f32.mrb[0].mxu0
    %v1135 = vpop.f32.mrb[0].mxu0
    %1136 = vdwg.mxu0
    %v1137 = vadd.f32 %v312, %v1132
    %1139 = vrot.lane.b32.xlu0 %v986, 96
    %v1140 = vpop.permute.xlu0 %1139
    %1142 = vrot.lane.b32.xlu0 %v987, 96
    %v1143 = vpop.permute.xlu0 %1142
    %v1145 = vsel %vm317, %v1140, 0
    %v1148 = vsel %vm317, %v1143, 0
    %1150 = vmatprep.subr.bf16.mxu0 0
    %1151 = vmatpush1.bf16.xpose.msra.mxu0 %v1148
    %1152 = vmatprep.subr.bf16.mxu0 0
    %1153 = vmatpush1.bf16.xpose.msra.mxu0 0
    %1154 = vmatprep.subr.bf16.mxu0 0
    %1155 = vmatpush1.bf16.xpose.msra.mxu0 0
    %1156 = vmatprep.subr.bf16.mxu0 0
    %1157 = vmatpush1.bf16.xpose.msra.mxu0 0
    %1158 = vmatprep.subr.bf16.mxu0 0
    %1159 = vmatpush1.bf16.xpose.msra.mxu0 0
    %1160 = vmatprep.subr.bf16.mxu0 0
    %1161 = vmatpush1.bf16.xpose.msra.mxu0 0
    %1162 = vmatprep.subr.bf16.mxu0 0
    %1163 = vmatpush1.bf16.xpose.msra.mxu0 0
    %1164 = vmatprep.subr.bf16.mxu0 0
    %1165 = vmatpush1.bf16.xpose.msra.mxu0 0
    %1166 = vmatprep.subr.bf16.mxu0 0
    %1167 = vmatpush1.bf16.xpose.msra.mxu0 0
    %1168 = vmatprep.subr.bf16.mxu0 0
    %1169 = vmatpush1.bf16.xpose.msra.mxu0 0
    %1170 = vmatprep.subr.bf16.mxu0 0
    %1171 = vmatpush1.bf16.xpose.msra.mxu0 0
    %1172 = vmatprep.subr.bf16.mxu0 0
    %1173 = vmatpush1.bf16.xpose.msra.mxu0 0
    %1174 = vmatprep.subr.bf16.mxu0 0
    %1175 = vmatpush1.bf16.xpose.msra.mxu0 0
    %1176 = vmatprep.subr.bf16.mxu0 0
    %1177 = vmatpush1.bf16.xpose.msra.mxu0 0
    %1178 = vmatprep.subr.bf16.mxu0 0
    %1179 = vmatpush1.bf16.xpose.msra.mxu0 0
    %1180 = vmatprep.subr.bf16.mxu0 0
    %1181 = vmatpush1.bf16.xpose.msra.mxu0 0
    %1182 = vmatprep.mubr.bf16.mxu0 0
    %1183 = vmatmul.mubr.bf16.gmra.mrb[0].mxu0 %v1145
    %v1184 = vpop.f32.mrb[0].mxu0
    %v1185 = vadd.f32 0.0, %v1184
    %v1186 = vpop.f32.mrb[0].mxu0
    %v1187 = vpop.f32.mrb[0].mxu0
    %v1188 = vpop.f32.mrb[0].mxu0
    %1189 = vdwg.mxu0
    %v1190 = vsel %vm364, %v1185, -inf
    %1191 = vmax.xlane.f32.xlu0 %v1190
    %v1192 = vpop.xlane.xlu0 %1191
    %v1193 = vsub.f32 %v1185, %v1192
    %v1194 = vmul.f32 %v1193, 1.442695
    %v1195 = vpow.pop %v1194
    %v1196 = vsel %vm364, %v1195, 0.0
    %1197 = vadd.xlane.f32.xlu0 %v1196
    %v1198 = vpop.xlane.xlu0 %1197
    %v1199 = vrcp.pop %v1198
    %v1200 = vmul.f32 %v1195, %v1199
    %v1201 = vpack.c.bf16 %v1200, %v1200
    %1203 = vrot.lane.b32.xlu0 %v988, 96
    %v1204 = vpop.permute.xlu0 %1203
    %v1206 = vsel %vm364, %v1201, 0
    %v1209 = vsel %vm380, %v1204, 0
    %1211 = vmatprep.subr.bf16.mxu0 0
    %1212 = vmatpush1.bf16.msra.mxu0 %v1209
    %1213 = vmatprep.subr.bf16.mxu0 0
    %1214 = vmatpush1.bf16.msra.mxu0 0
    %1215 = vmatprep.subr.bf16.mxu0 0
    %1216 = vmatpush1.bf16.msra.mxu0 0
    %1217 = vmatprep.subr.bf16.mxu0 0
    %1218 = vmatpush1.bf16.msra.mxu0 0
    %1219 = vmatprep.subr.bf16.mxu0 0
    %1220 = vmatpush1.bf16.msra.mxu0 0
    %1221 = vmatprep.subr.bf16.mxu0 0
    %1222 = vmatpush1.bf16.msra.mxu0 0
    %1223 = vmatprep.subr.bf16.mxu0 0
    %1224 = vmatpush1.bf16.msra.mxu0 0
    %1225 = vmatprep.subr.bf16.mxu0 0
    %1226 = vmatpush1.bf16.msra.mxu0 0
    %1227 = vmatprep.subr.bf16.mxu0 0
    %1228 = vmatpush1.bf16.msra.mxu0 0
    %1229 = vmatprep.subr.bf16.mxu0 0
    %1230 = vmatpush1.bf16.msra.mxu0 0
    %1231 = vmatprep.subr.bf16.mxu0 0
    %1232 = vmatpush1.bf16.msra.mxu0 0
    %1233 = vmatprep.subr.bf16.mxu0 0
    %1234 = vmatpush1.bf16.msra.mxu0 0
    %1235 = vmatprep.subr.bf16.mxu0 0
    %1236 = vmatpush1.bf16.msra.mxu0 0
    %1237 = vmatprep.subr.bf16.mxu0 0
    %1238 = vmatpush1.bf16.msra.mxu0 0
    %1239 = vmatprep.subr.bf16.mxu0 0
    %1240 = vmatpush1.bf16.msra.mxu0 0
    %1241 = vmatprep.subr.bf16.mxu0 0
    %1242 = vmatpush1.bf16.msra.mxu0 0
    %1243 = vmatprep.mubr.bf16.mxu0 0
    %1244 = vmatmul.mubr.bf16.gmra.mrb[0].mxu0 %v1206
    %v1245 = vpop.f32.mrb[0].mxu0
    %v1246 = vadd.f32 0.0, %v1245
    %v1247 = vpop.f32.mrb[0].mxu0
    %v1248 = vpop.f32.mrb[0].mxu0
    %v1249 = vpop.f32.mrb[0].mxu0
    %1250 = vdwg.mxu0
    %v1251 = vpack.c.bf16 %v1246, %v1246
    %v1253 = vsel %vm317, %v1251, 0
    %1255 = vmatprep.subr.bf16.mxu0 0
    %1256 = vmatpush1.bf16.msra.mxu0 %v603
    %1257 = vmatprep.subr.bf16.mxu0 0
    %1258 = vmatpush1.bf16.msra.mxu0 %v604
    %1259 = vmatprep.subr.bf16.mxu0 0
    %1260 = vmatpush1.bf16.msra.mxu0 0
    %1261 = vmatprep.subr.bf16.mxu0 0
    %1262 = vmatpush1.bf16.msra.mxu0 0
    %1263 = vmatprep.subr.bf16.mxu0 0
    %1264 = vmatpush1.bf16.msra.mxu0 0
    %1265 = vmatprep.subr.bf16.mxu0 0
    %1266 = vmatpush1.bf16.msra.mxu0 0
    %1267 = vmatprep.subr.bf16.mxu0 0
    %1268 = vmatpush1.bf16.msra.mxu0 0
    %1269 = vmatprep.subr.bf16.mxu0 0
    %1270 = vmatpush1.bf16.msra.mxu0 0
    %1271 = vmatprep.subr.bf16.mxu0 0
    %1272 = vmatpush1.bf16.msra.mxu0 0
    %1273 = vmatprep.subr.bf16.mxu0 0
    %1274 = vmatpush1.bf16.msra.mxu0 0
    %1275 = vmatprep.subr.bf16.mxu0 0
    %1276 = vmatpush1.bf16.msra.mxu0 0
    %1277 = vmatprep.subr.bf16.mxu0 0
    %1278 = vmatpush1.bf16.msra.mxu0 0
    %1279 = vmatprep.subr.bf16.mxu0 0
    %1280 = vmatpush1.bf16.msra.mxu0 0
    %1281 = vmatprep.subr.bf16.mxu0 0
    %1282 = vmatpush1.bf16.msra.mxu0 0
    %1283 = vmatprep.subr.bf16.mxu0 0
    %1284 = vmatpush1.bf16.msra.mxu0 0
    %1285 = vmatprep.subr.bf16.mxu0 0
    %1286 = vmatpush1.bf16.msra.mxu0 0
    %1287 = vmatprep.mubr.bf16.mxu0 0
    %1288 = vmatmul.mubr.bf16.gmra.mrb[0].mxu0 %v1253
    %v1289 = vpop.f32.mrb[0].mxu0
    %v1290 = vadd.f32 0.0, %v1289
    %v1291 = vpop.f32.mrb[0].mxu0
    %v1292 = vpop.f32.mrb[0].mxu0
    %v1293 = vpop.f32.mrb[0].mxu0
    %1294 = vdwg.mxu0
    %v1295 = vadd.f32 %v1137, %v1290
    %1296 = vrot.lane.b32.xlu0 %v986, 64
    %v1297 = vpop.permute.xlu0 %1296
    %1298 = vrot.lane.b32.xlu0 %v987, 64
    %v1299 = vpop.permute.xlu0 %1298
    %v1301 = vsel %vm317, %v1297, 0
    %v1304 = vsel %vm317, %v1299, 0
    %1306 = vmatprep.subr.bf16.mxu0 0
    %1307 = vmatpush1.bf16.xpose.msra.mxu0 %v1304
    %1308 = vmatprep.subr.bf16.mxu0 0
    %1309 = vmatpush1.bf16.xpose.msra.mxu0 0
    %1310 = vmatprep.subr.bf16.mxu0 0
    %1311 = vmatpush1.bf16.xpose.msra.mxu0 0
    %1312 = vmatprep.subr.bf16.mxu0 0
    %1313 = vmatpush1.bf16.xpose.msra.mxu0 0
    %1314 = vmatprep.subr.bf16.mxu0 0
    %1315 = vmatpush1.bf16.xpose.msra.mxu0 0
    %1316 = vmatprep.subr.bf16.mxu0 0
    %1317 = vmatpush1.bf16.xpose.msra.mxu0 0
    %1318 = vmatprep.subr.bf16.mxu0 0
    %1319 = vmatpush1.bf16.xpose.msra.mxu0 0
    %1320 = vmatprep.subr.bf16.mxu0 0
    %1321 = vmatpush1.bf16.xpose.msra.mxu0 0
    %1322 = vmatprep.subr.bf16.mxu0 0
    %1323 = vmatpush1.bf16.xpose.msra.mxu0 0
    %1324 = vmatprep.subr.bf16.mxu0 0
    %1325 = vmatpush1.bf16.xpose.msra.mxu0 0
    %1326 = vmatprep.subr.bf16.mxu0 0
    %1327 = vmatpush1.bf16.xpose.msra.mxu0 0
    %1328 = vmatprep.subr.bf16.mxu0 0
    %1329 = vmatpush1.bf16.xpose.msra.mxu0 0
    %1330 = vmatprep.subr.bf16.mxu0 0
    %1331 = vmatpush1.bf16.xpose.msra.mxu0 0
    %1332 = vmatprep.subr.bf16.mxu0 0
    %1333 = vmatpush1.bf16.xpose.msra.mxu0 0
    %1334 = vmatprep.subr.bf16.mxu0 0
    %1335 = vmatpush1.bf16.xpose.msra.mxu0 0
    %1336 = vmatprep.subr.bf16.mxu0 0
    %1337 = vmatpush1.bf16.xpose.msra.mxu0 0
    %1338 = vmatprep.mubr.bf16.mxu0 0
    %1339 = vmatmul.mubr.bf16.gmra.mrb[0].mxu0 %v1301
    %v1340 = vpop.f32.mrb[0].mxu0
    %v1341 = vadd.f32 0.0, %v1340
    %v1342 = vpop.f32.mrb[0].mxu0
    %v1343 = vpop.f32.mrb[0].mxu0
    %v1344 = vpop.f32.mrb[0].mxu0
    %1345 = vdwg.mxu0
    %v1346 = vsel %vm364, %v1341, -inf
    %1347 = vmax.xlane.f32.xlu0 %v1346
    %v1348 = vpop.xlane.xlu0 %1347
    %v1349 = vsub.f32 %v1341, %v1348
    %v1350 = vmul.f32 %v1349, 1.442695
    %v1351 = vpow.pop %v1350
    %v1352 = vsel %vm364, %v1351, 0.0
    %1353 = vadd.xlane.f32.xlu0 %v1352
    %v1354 = vpop.xlane.xlu0 %1353
    %v1355 = vrcp.pop %v1354
    %v1356 = vmul.f32 %v1351, %v1355
    %v1357 = vpack.c.bf16 %v1356, %v1356
    %1358 = vrot.lane.b32.xlu0 %v988, 64
    %v1359 = vpop.permute.xlu0 %1358
    %v1361 = vsel %vm364, %v1357, 0
    %v1364 = vsel %vm380, %v1359, 0
    %1366 = vmatprep.subr.bf16.mxu0 0
    %1367 = vmatpush1.bf16.msra.mxu0 %v1364
    %1368 = vmatprep.subr.bf16.mxu0 0
    %1369 = vmatpush1.bf16.msra.mxu0 0
    %1370 = vmatprep.subr.bf16.mxu0 0
    %1371 = vmatpush1.bf16.msra.mxu0 0
    %1372 = vmatprep.subr.bf16.mxu0 0
    %1373 = vmatpush1.bf16.msra.mxu0 0
    %1374 = vmatprep.subr.bf16.mxu0 0
    %1375 = vmatpush1.bf16.msra.mxu0 0
    %1376 = vmatprep.subr.bf16.mxu0 0
    %1377 = vmatpush1.bf16.msra.mxu0 0
    %1378 = vmatprep.subr.bf16.mxu0 0
    %1379 = vmatpush1.bf16.msra.mxu0 0
    %1380 = vmatprep.subr.bf16.mxu0 0
    %1381 = vmatpush1.bf16.msra.mxu0 0
    %1382 = vmatprep.subr.bf16.mxu0 0
    %1383 = vmatpush1.bf16.msra.mxu0 0
    %1384 = vmatprep.subr.bf16.mxu0 0
    %1385 = vmatpush1.bf16.msra.mxu0 0
    %1386 = vmatprep.subr.bf16.mxu0 0
    %1387 = vmatpush1.bf16.msra.mxu0 0
    %1388 = vmatprep.subr.bf16.mxu0 0
    %1389 = vmatpush1.bf16.msra.mxu0 0
    %1390 = vmatprep.subr.bf16.mxu0 0
    %1391 = vmatpush1.bf16.msra.mxu0 0
    %1392 = vmatprep.subr.bf16.mxu0 0
    %1393 = vmatpush1.bf16.msra.mxu0 0
    %1394 = vmatprep.subr.bf16.mxu0 0
    %1395 = vmatpush1.bf16.msra.mxu0 0
    %1396 = vmatprep.subr.bf16.mxu0 0
    %1397 = vmatpush1.bf16.msra.mxu0 0
    %1398 = vmatprep.mubr.bf16.mxu0 0
    %1399 = vmatmul.mubr.bf16.gmra.mrb[0].mxu0 %v1361
    %v1400 = vpop.f32.mrb[0].mxu0
    %v1401 = vadd.f32 0.0, %v1400
    %v1402 = vpop.f32.mrb[0].mxu0
    %v1403 = vpop.f32.mrb[0].mxu0
    %v1404 = vpop.f32.mrb[0].mxu0
    %1405 = vdwg.mxu0
    %v1406 = vpack.c.bf16 %v1401, %v1401
    %v1408 = vsel %vm317, %v1406, 0
    %1410 = vmatprep.subr.bf16.mxu0 0
    %1411 = vmatpush1.bf16.msra.mxu0 %v770
    %1412 = vmatprep.subr.bf16.mxu0 0
    %1413 = vmatpush1.bf16.msra.mxu0 %v771
    %1414 = vmatprep.subr.bf16.mxu0 0
    %1415 = vmatpush1.bf16.msra.mxu0 0
    %1416 = vmatprep.subr.bf16.mxu0 0
    %1417 = vmatpush1.bf16.msra.mxu0 0
    %1418 = vmatprep.subr.bf16.mxu0 0
    %1419 = vmatpush1.bf16.msra.mxu0 0
    %1420 = vmatprep.subr.bf16.mxu0 0
    %1421 = vmatpush1.bf16.msra.mxu0 0
    %1422 = vmatprep.subr.bf16.mxu0 0
    %1423 = vmatpush1.bf16.msra.mxu0 0
    %1424 = vmatprep.subr.bf16.mxu0 0
    %1425 = vmatpush1.bf16.msra.mxu0 0
    %1426 = vmatprep.subr.bf16.mxu0 0
    %1427 = vmatpush1.bf16.msra.mxu0 0
    %1428 = vmatprep.subr.bf16.mxu0 0
    %1429 = vmatpush1.bf16.msra.mxu0 0
    %1430 = vmatprep.subr.bf16.mxu0 0
    %1431 = vmatpush1.bf16.msra.mxu0 0
    %1432 = vmatprep.subr.bf16.mxu0 0
    %1433 = vmatpush1.bf16.msra.mxu0 0
    %1434 = vmatprep.subr.bf16.mxu0 0
    %1435 = vmatpush1.bf16.msra.mxu0 0
    %1436 = vmatprep.subr.bf16.mxu0 0
    %1437 = vmatpush1.bf16.msra.mxu0 0
    %1438 = vmatprep.subr.bf16.mxu0 0
    %1439 = vmatpush1.bf16.msra.mxu0 0
    %1440 = vmatprep.subr.bf16.mxu0 0
    %1441 = vmatpush1.bf16.msra.mxu0 0
    %1442 = vmatprep.mubr.bf16.mxu0 0
    %1443 = vmatmul.mubr.bf16.gmra.mrb[0].mxu0 %v1408
    %v1444 = vpop.f32.mrb[0].mxu0
    %v1445 = vadd.f32 0.0, %v1444
    %v1446 = vpop.f32.mrb[0].mxu0
    %v1447 = vpop.f32.mrb[0].mxu0
    %v1448 = vpop.f32.mrb[0].mxu0
    %1449 = vdwg.mxu0
    %v1450 = vadd.f32 %v1295, %v1445
    %1451 = vrot.lane.b32.xlu0 %v986, 32
    %v1452 = vpop.permute.xlu0 %1451
    %1453 = vrot.lane.b32.xlu0 %v987, 32
    %v1454 = vpop.permute.xlu0 %1453
    %v1456 = vsel %vm317, %v1452, 0
    %v1459 = vsel %vm317, %v1454, 0
    %1461 = vmatprep.subr.bf16.mxu0 0
    %1462 = vmatpush1.bf16.xpose.msra.mxu0 %v1459
    %1463 = vmatprep.subr.bf16.mxu0 0
    %1464 = vmatpush1.bf16.xpose.msra.mxu0 0
    %1465 = vmatprep.subr.bf16.mxu0 0
    %1466 = vmatpush1.bf16.xpose.msra.mxu0 0
    %1467 = vmatprep.subr.bf16.mxu0 0
    %1468 = vmatpush1.bf16.xpose.msra.mxu0 0
    %1469 = vmatprep.subr.bf16.mxu0 0
    %1470 = vmatpush1.bf16.xpose.msra.mxu0 0
    %1471 = vmatprep.subr.bf16.mxu0 0
    %1472 = vmatpush1.bf16.xpose.msra.mxu0 0
    %1473 = vmatprep.subr.bf16.mxu0 0
    %1474 = vmatpush1.bf16.xpose.msra.mxu0 0
    %1475 = vmatprep.subr.bf16.mxu0 0
    %1476 = vmatpush1.bf16.xpose.msra.mxu0 0
    %1477 = vmatprep.subr.bf16.mxu0 0
    %1478 = vmatpush1.bf16.xpose.msra.mxu0 0
    %1479 = vmatprep.subr.bf16.mxu0 0
    %1480 = vmatpush1.bf16.xpose.msra.mxu0 0
    %1481 = vmatprep.subr.bf16.mxu0 0
    %1482 = vmatpush1.bf16.xpose.msra.mxu0 0
    %1483 = vmatprep.subr.bf16.mxu0 0
    %1484 = vmatpush1.bf16.xpose.msra.mxu0 0
    %1485 = vmatprep.subr.bf16.mxu0 0
    %1486 = vmatpush1.bf16.xpose.msra.mxu0 0
    %1487 = vmatprep.subr.bf16.mxu0 0
    %1488 = vmatpush1.bf16.xpose.msra.mxu0 0
    %1489 = vmatprep.subr.bf16.mxu0 0
    %1490 = vmatpush1.bf16.xpose.msra.mxu0 0
    %1491 = vmatprep.subr.bf16.mxu0 0
    %1492 = vmatpush1.bf16.xpose.msra.mxu0 0
    %1493 = vmatprep.mubr.bf16.mxu0 0
    %1494 = vmatmul.mubr.bf16.gmra.mrb[0].mxu0 %v1456
    %v1495 = vpop.f32.mrb[0].mxu0
    %v1496 = vadd.f32 0.0, %v1495
    %v1497 = vpop.f32.mrb[0].mxu0
    %v1498 = vpop.f32.mrb[0].mxu0
    %v1499 = vpop.f32.mrb[0].mxu0
    %1500 = vdwg.mxu0
    %v1501 = vsel %vm364, %v1496, -inf
    %1502 = vmax.xlane.f32.xlu0 %v1501
    %v1503 = vpop.xlane.xlu0 %1502
    %v1504 = vsub.f32 %v1496, %v1503
    %v1505 = vmul.f32 %v1504, 1.442695
    %v1506 = vpow.pop %v1505
    %v1507 = vsel %vm364, %v1506, 0.0
    %1508 = vadd.xlane.f32.xlu0 %v1507
    %v1509 = vpop.xlane.xlu0 %1508
    %v1510 = vrcp.pop %v1509
    %v1511 = vmul.f32 %v1506, %v1510
    %v1512 = vpack.c.bf16 %v1511, %v1511
    %1513 = vrot.lane.b32.xlu0 %v988, 32
    %v1514 = vpop.permute.xlu0 %1513
    %v1516 = vsel %vm364, %v1512, 0
    %v1519 = vsel %vm380, %v1514, 0
    %1521 = vmatprep.subr.bf16.mxu0 0
    %1522 = vmatpush1.bf16.msra.mxu0 %v1519
    %1523 = vmatprep.subr.bf16.mxu0 0
    %1524 = vmatpush1.bf16.msra.mxu0 0
    %1525 = vmatprep.subr.bf16.mxu0 0
    %1526 = vmatpush1.bf16.msra.mxu0 0
    %1527 = vmatprep.subr.bf16.mxu0 0
    %1528 = vmatpush1.bf16.msra.mxu0 0
    %1529 = vmatprep.subr.bf16.mxu0 0
    %1530 = vmatpush1.bf16.msra.mxu0 0
    %1531 = vmatprep.subr.bf16.mxu0 0
    %1532 = vmatpush1.bf16.msra.mxu0 0
    %1533 = vmatprep.subr.bf16.mxu0 0
    %1534 = vmatpush1.bf16.msra.mxu0 0
    %1535 = vmatprep.subr.bf16.mxu0 0
    %1536 = vmatpush1.bf16.msra.mxu0 0
    %1537 = vmatprep.subr.bf16.mxu0 0
    %1538 = vmatpush1.bf16.msra.mxu0 0
    %1539 = vmatprep.subr.bf16.mxu0 0
    %1540 = vmatpush1.bf16.msra.mxu0 0
    %1541 = vmatprep.subr.bf16.mxu0 0
    %1542 = vmatpush1.bf16.msra.mxu0 0
    %1543 = vmatprep.subr.bf16.mxu0 0
    %1544 = vmatpush1.bf16.msra.mxu0 0
    %1545 = vmatprep.subr.bf16.mxu0 0
    %1546 = vmatpush1.bf16.msra.mxu0 0
    %1547 = vmatprep.subr.bf16.mxu0 0
    %1548 = vmatpush1.bf16.msra.mxu0 0
    %1549 = vmatprep.subr.bf16.mxu0 0
    %1550 = vmatpush1.bf16.msra.mxu0 0
    %1551 = vmatprep.subr.bf16.mxu0 0
    %1552 = vmatpush1.bf16.msra.mxu0 0
    %1553 = vmatprep.mubr.bf16.mxu0 0
    %1554 = vmatmul.mubr.bf16.gmra.mrb[0].mxu0 %v1516
    %v1555 = vpop.f32.mrb[0].mxu0
    %v1556 = vadd.f32 0.0, %v1555
    %v1557 = vpop.f32.mrb[0].mxu0
    %v1558 = vpop.f32.mrb[0].mxu0
    %v1559 = vpop.f32.mrb[0].mxu0
    %1560 = vdwg.mxu0
    %v1561 = vpack.c.bf16 %v1556, %v1556
    %v1563 = vsel %vm317, %v1561, 0
    %1565 = vmatprep.subr.bf16.mxu0 0
    %1566 = vmatpush1.bf16.msra.mxu0 %v937
    %1567 = vmatprep.subr.bf16.mxu0 0
    %1568 = vmatpush1.bf16.msra.mxu0 %v938
    %1569 = vmatprep.subr.bf16.mxu0 0
    %1570 = vmatpush1.bf16.msra.mxu0 0
    %1571 = vmatprep.subr.bf16.mxu0 0
    %1572 = vmatpush1.bf16.msra.mxu0 0
    %1573 = vmatprep.subr.bf16.mxu0 0
    %1574 = vmatpush1.bf16.msra.mxu0 0
    %1575 = vmatprep.subr.bf16.mxu0 0
    %1576 = vmatpush1.bf16.msra.mxu0 0
    %1577 = vmatprep.subr.bf16.mxu0 0
    %1578 = vmatpush1.bf16.msra.mxu0 0
    %1579 = vmatprep.subr.bf16.mxu0 0
    %1580 = vmatpush1.bf16.msra.mxu0 0
    %1581 = vmatprep.subr.bf16.mxu0 0
    %1582 = vmatpush1.bf16.msra.mxu0 0
    %1583 = vmatprep.subr.bf16.mxu0 0
    %1584 = vmatpush1.bf16.msra.mxu0 0
    %1585 = vmatprep.subr.bf16.mxu0 0
    %1586 = vmatpush1.bf16.msra.mxu0 0
    %1587 = vmatprep.subr.bf16.mxu0 0
    %1588 = vmatpush1.bf16.msra.mxu0 0
    %1589 = vmatprep.subr.bf16.mxu0 0
    %1590 = vmatpush1.bf16.msra.mxu0 0
    %1591 = vmatprep.subr.bf16.mxu0 0
    %1592 = vmatpush1.bf16.msra.mxu0 0
    %1593 = vmatprep.subr.bf16.mxu0 0
    %1594 = vmatpush1.bf16.msra.mxu0 0
    %1595 = vmatprep.subr.bf16.mxu0 0
    %1596 = vmatpush1.bf16.msra.mxu0 0
    %1597 = vmatprep.mubr.bf16.mxu0 0
    %1598 = vmatmul.mubr.bf16.gmra.mrb[0].mxu0 %v1563
    %v1599 = vpop.f32.mrb[0].mxu0
    %v1600 = vadd.f32 0.0, %v1599
    %v1601 = vpop.f32.mrb[0].mxu0
    %v1602 = vpop.f32.mrb[0].mxu0
    %v1603 = vpop.f32.mrb[0].mxu0
    %1604 = vdwg.mxu0
    %v1605 = vadd.f32 %v1450, %v1600
    %1606 = vst [vmem:[#allocation2 + $0x8] sm:$0xff] %v1605
    // Predicated region
    $region22: #{multi_head_attention.1} parent=1 // pred_check
      _
    $region23: #{multi_head_attention.1} parent=1 // pred_check_branch
      %1608 = sbr.rel (0) target = $region25
    $region24: #{multi_head_attention.1} parent=1 // pred_region
      %s1610 = ssub.s32 256, 256
      %1611 = vsyncadd [#allocation3], %s1610
      %s1612 = sshll.u32 [#allocation2], 4
      %s1613 = int_to_ptr.vmem [resolvable:$true] %s1612
      %1618 = dma.vmem_to_hbm [thread:$0]  %s1613, 256, %s5, [#allocation3], 128, 128, 8
    $region25: #{multi_head_attention.1} parent=1 // pred_fallthru
      _
    // Predicated region
    $region26: #{multi_head_attention.1} parent=1 // pred_check
      _
    $region27: #{multi_head_attention.1} parent=1 // pred_check_branch
      %1620 = sbr.rel (0) target = $region29
    $region28: #{multi_head_attention.1} parent=1 // pred_region
      %1621 = dma.done [#allocation3], 256
    $region29: #{multi_head_attention.1} parent=1 // pred_fallthru
      _
    %1622 = vsyncpa [#allocation3], 1

</llo_original>
